<compile_context>
chip_gen: v6e
topology: v6e:2x2x1
jax: 0.10.0
libtpu: 0.0.40
codegen_flags: <defaults>
</compile_context>

<pallas_src>
import functools

import jax
import jax.numpy as jnp
from jax import lax
from jax.experimental import pallas as pl
from jax.experimental.pallas import tpu as pltpu


_LANE = 128
_SUBLANE = 8


def _round_up(x, m):
    return (x + m - 1) // m * m


@functools.lru_cache(maxsize=None)
def _vmem_budgets():
    """(vmem_limit_bytes, per-kernel tile budget) — generation aware."""
    cap = 64 * 1024 * 1024                       # conservative fallback (v7x)
    try:
        info = pltpu.get_tpu_info()
        c = int(getattr(info, "vmem_capacity_bytes", 0))
        if c >= 16 * 1024 * 1024:
            cap = c
    except Exception:
        pass
    limit = min(int(cap * 0.75), 100 * 1024 * 1024)
    budget = min(int(cap * 0.40), 56 * 1024 * 1024)
    return limit, budget


# ----------------------------------------------------------------------------
# Fused backbone (3x3 conv s4 p1 + ReLU) + classifier (1x1 conv) kernel
# ----------------------------------------------------------------------------
def _fused_conv_head_kernel(p_ref, wbb_ref, bbb_ref, wcls_ref, bcls_ref, o_ref):
    """p:(TM,Kp)  wbb:(Kp,Cfp)  bbb:(1,Cfp)  wcls:(Cfp,Np)  bcls:(1,Np)  o:(TM,Np)."""
    # Feature tile stays in VMEM / vregs — never written to HBM.
    feat = jnp.dot(p_ref[...], wbb_ref[...], preferred_element_type=jnp.float32)
    feat = jnp.maximum(feat + bbb_ref[...], 0.0)
    logits = jnp.dot(feat.astype(wcls_ref.dtype), wcls_ref[...],
                     preferred_element_type=jnp.float32)
    o_ref[...] = (logits + bcls_ref[...]).astype(o_ref.dtype)


def _pick_row_tile(m, kp, cfp, np_, in_itemsize, out_itemsize, budget):
    # Cap so the 1-D grid has >= 2 steps (both v7x TensorCores get work).
    cap = max(_SUBLANE, _round_up(max(m, 1 + 1) // 2 if m > 1 else 1, _SUBLANE))
    cap = max(_SUBLANE, _round_up((m + 1) // 2, _SUBLANE))
    # Resident weights (conservatively double-buffered) + biases.
    resident = 2 * (kp * cfp + cfp * np_) * in_itemsize + 2 * (cfp + np_) * 4
    for tm in (8192, 4096, 2048, 1024, 512, 256, 128, 64, 32, 16, 8):
        if tm > cap:
            continue
        need = (2 * tm * kp * in_itemsize        # pipelined patch tiles
                + 2 * tm * np_ * out_itemsize    # pipelined logits tiles
                + tm * cfp * 4                   # f32 feat intermediate
                + tm * np_ * 4                   # f32 logits intermediate
                + resident)
        if need <= budget:
            return tm
    return _SUBLANE


def _fused_backbone_classifier(patches, w_bb, b_bb, w_cls, b_cls, *, mxu_dtype):
    M, Kp = patches.shape
    Cfp = w_bb.shape[1]
    Np = w_cls.shape[1]
    in_itemsize = jnp.dtype(mxu_dtype).itemsize
    vmem_limit, budget = _vmem_budgets()

    tm = _pick_row_tile(M, Kp, Cfp, Np, in_itemsize, in_itemsize, budget)
    Mp = _round_up(M, tm)
    if Mp > M:
        patches = jnp.pad(patches, ((0, Mp - M), (0, 0)))

    return pl.pallas_call(
        _fused_conv_head_kernel,
        out_shape=jax.ShapeDtypeStruct((Mp, Np), mxu_dtype),   # bf16 logits
        grid=(Mp // tm,),
        in_specs=[
            pl.BlockSpec((tm, Kp), lambda i: (i, 0)),       # pipelined patch tile
            pl.BlockSpec((Kp, Cfp), lambda i: (0, 0)),      # resident weights
            pl.BlockSpec((1, Cfp), lambda i: (0, 0)),
            pl.BlockSpec((Cfp, Np), lambda i: (0, 0)),
            pl.BlockSpec((1, Np), lambda i: (0, 0)),
        ],
        out_specs=pl.BlockSpec((tm, Np), lambda i: (i, 0)),
        compiler_params=pltpu.CompilerParams(
            dimension_semantics=("parallel",),
            vmem_limit_bytes=vmem_limit),
    )(patches, w_bb, b_bb, w_cls, b_cls)


# ----------------------------------------------------------------------------
# Bilinear upsample kernel: per-plane Wh@F into scratch, then one batched
# lane-dense matmul against Ww^T with a single 2-D store stream.
# ----------------------------------------------------------------------------
def _bilinear_kernel(f_ref, wh_ref, wwt_ref, o_ref, g_ref):
    """f:(cb,Hfp,Wfp)  wh:(Hp,Hfp)  wwt:(Wfp,Wp)  o:(cb*Hp,Wp)  g:(cb*Hp,Wfp)."""
    cb = f_ref.shape[0]
    Hp = wh_ref.shape[0]
    wh = wh_ref[...]

    def body(c, carry):
        row = pl.multiple_of(c * Hp, _SUBLANE)         # Hp is a multiple of 8
        r = jnp.dot(wh, f_ref[c], preferred_element_type=jnp.float32)
        g_ref[pl.ds(row, Hp), :] = r.astype(g_ref.dtype)
        return carry

    lax.fori_loop(0, cb, body, 0, unroll=True)
    o_ref[...] = jnp.dot(g_ref[...], wwt_ref[...],
                         preferred_element_type=jnp.float32).astype(o_ref.dtype)


def _pick_plane_tile(bc, hfp, wfp, hp, wp, in_itemsize, out_itemsize, budget):
    cap = max(1, bc // 2)                               # >= 2 grid steps
    resident = 2 * (hp * hfp + wfp * wp) * in_itemsize  # resident wh / wwt
    for cb in (64, 32, 16, 8, 4, 2, 1):
        if cb > cap:
            continue
        need = (2 * cb * hfp * wfp * in_itemsize        # pipelined plane tiles
                + 2 * cb * hp * wp * out_itemsize       # pipelined output tiles
                + cb * hp * wfp * in_itemsize           # g scratch
                + cb * hp * wp * 4                      # f32 matmul result
                + resident)
        if need <= budget:
            return cb
    return 1


def _pallas_bilinear(planes, wh, ww, *, mxu_dtype):
    """planes:(BC,Hf,Wf)  wh:(H,Hf)  ww:(W,Wf)  ->  (BC,H,W) float32."""
    BC, Hf, Wf = planes.shape
    H = wh.shape[0]
    W = ww.shape[0]

    Hfp = _round_up(Hf, _SUBLANE)
    Wfp = _round_up(Wf, _SUBLANE)
    Hp = _round_up(H, _SUBLANE)
    Wp = W if (W % _LANE == 0 or W < _LANE) else _round_up(W, _LANE)

    in_itemsize = jnp.dtype(mxu_dtype).itemsize
    vmem_limit, budget = _vmem_budgets()
    cb = _pick_plane_tile(BC, Hfp, Wfp, Hp, Wp, in_itemsize, 4, budget)
    BCp = _round_up(BC, cb)

    planes_p = jnp.pad(planes.astype(mxu_dtype),
                       ((0, BCp - BC), (0, Hfp - Hf), (0, Wfp - Wf)))
    wh_p = jnp.zeros((Hp, Hfp), mxu_dtype).at[:H, :Hf].set(wh.astype(mxu_dtype))
    wwt_p = jnp.zeros((Wfp, Wp), mxu_dtype).at[:Wf, :W].set(ww.T.astype(mxu_dtype))

    out2d = pl.pallas_call(
        _bilinear_kernel,
        out_shape=jax.ShapeDtypeStruct((BCp * Hp, Wp), jnp.float32),
        grid=(BCp // cb,),
        in_specs=[
            pl.BlockSpec((cb, Hfp, Wfp), lambda i: (i, 0, 0)),
            pl.BlockSpec((Hp, Hfp), lambda i: (0, 0)),
            pl.BlockSpec((Wfp, Wp), lambda i: (0, 0)),
        ],
        out_specs=pl.BlockSpec((cb * Hp, Wp), lambda i: (i, 0)),
        scratch_shapes=[pltpu.VMEM((cb * Hp, Wfp), mxu_dtype)],
        compiler_params=pltpu.CompilerParams(
            dimension_semantics=("parallel",),
            vmem_limit_bytes=vmem_limit),
    )(planes_p, wh_p, wwt_p)

    return out2d.reshape(BCp, Hp, Wp)[:BC, :H, :W]


# ----------------------------------------------------------------------------
# Glue: bilinear weight matrices, parameter init
# ----------------------------------------------------------------------------
def _bilinear_weight(out_size, in_size):
    """PyTorch F.interpolate(mode='bilinear', align_corners=False) row matrix."""
    dst = jnp.arange(out_size, dtype=jnp.float32)
    src = (dst + 0.5) * (in_size / out_size) - 0.5
    src = jnp.maximum(src, 0.0)
    i0 = jnp.floor(src).astype(jnp.int32)
    i1 = jnp.minimum(i0 + 1, in_size - 1)
    lam = src - i0.astype(jnp.float32)
    w = ((1.0 - lam)[:, None] * jax.nn.one_hot(i0, in_size, dtype=jnp.float32)
         + lam[:, None] * jax.nn.one_hot(i1, in_size, dtype=jnp.float32))
    return w


def init_params(key, cin, cfeat, ncls, ksize=3):
    k1, k2, k3, k4 = jax.random.split(key, 4)
    return {
        # backbone: 3x3 conv, stride 4, pad 1, ReLU
        "w_bb": jax.random.normal(k1, (cfeat, cin, ksize, ksize), jnp.float32) * 0.1,
        "b_bb": jax.random.normal(k2, (cfeat,), jnp.float32) * 0.01,
        # classifier (segmentation head): 1x1 conv to num_classes
        "w_cls": jax.random.normal(k3, (ncls, cfeat), jnp.float32) * 0.1,
        "b_cls": jax.random.normal(k4, (ncls,), jnp.float32) * 0.01,
    }


# ----------------------------------------------------------------------------
# Forward pass (mirrors CustomDeepLabV3.forward)
# ----------------------------------------------------------------------------
def custom_deeplabv3_forward(params, x, *, mxu_dtype=jnp.bfloat16):
    B, Cin, H, W = x.shape
    ksize, stride, pad = 3, 4, 1
    Hf = (H + 2 * pad - ksize) // stride + 1
    Wf = (W + 2 * pad - ksize) // stride + 1
    Cf = params["w_bb"].shape[0]
    Ncls = params["w_cls"].shape[0]

    # ---- im2col patch gather, built directly in bf16 (single up-front cast).
    #      K is padded only to a multiple of 8 (weight sublane dim), NOT 128.
    xn = x.astype(mxu_dtype).transpose(0, 2, 3, 1)                 # (B,H,W,Cin)
    xp = jnp.pad(xn, ((0, 0), (pad, pad), (pad, pad), (0, 0)))
    cols = []
    for kh in range(ksize):
        for kw in range(ksize):
            cols.append(xp[:, kh:kh + stride * (Hf - 1) + 1:stride,
                            kw:kw + stride * (Wf - 1) + 1:stride, :])
    K = Cin * ksize * ksize
    Kp = _round_up(K, _SUBLANE)
    if Kp > K:
        cols.append(jnp.zeros((B, Hf, Wf, Kp - K), mxu_dtype))
    patches = jnp.concatenate(cols, axis=-1).reshape(B * Hf * Wf, Kp)

    # ---- MXU/lane-aligned (zero-padded) parameters, built in bf16
    Cfp = _round_up(Cf, _LANE)
    Np = _round_up(Ncls, _LANE)
    w_bb2 = params["w_bb"].transpose(2, 3, 1, 0).reshape(K, Cf)    # (kh,kw,cin) rows
    w_bb_p = jnp.zeros((Kp, Cfp), mxu_dtype).at[:K, :Cf].set(w_bb2.astype(mxu_dtype))
    b_bb_p = jnp.zeros((1, Cfp), jnp.float32).at[0, :Cf].set(params["b_bb"])
    w_cls_p = jnp.zeros((Cfp, Np), mxu_dtype).at[:Cf, :Ncls].set(
        params["w_cls"].T.astype(mxu_dtype))
    b_cls_p = jnp.zeros((1, Np), jnp.float32).at[0, :Ncls].set(params["b_cls"])

    # ---- fused backbone + classifier: one tiled, pipelined Pallas kernel
    logits_pad = _fused_backbone_classifier(
        patches, w_bb_p, b_bb_p, w_cls_p, b_cls_p, mxu_dtype=mxu_dtype)

    M = B * Hf * Wf
    logits = logits_pad[:M, :Ncls].reshape(B, Hf, Wf, Ncls)        # bf16, small
    # Only the SMALL feature-resolution logits are reordered to planes.
    planes = logits.transpose(0, 3, 1, 2).reshape(B * Ncls, Hf, Wf)

    # ---- bilinear upsample back to input resolution (align_corners=False)
    wh = _bilinear_weight(H, Hf)                                   # (H, Hf)
    ww = _bilinear_weight(W, Wf)                                   # (W, Wf)
    up = _pallas_bilinear(planes, wh, ww, mxu_dtype=mxu_dtype)     # (B*Ncls,H,W) f32
    out = up.reshape(B, Ncls, H, W)                                # NCHW, no transpose

    return {"out": out}


# ----------------------------------------------------------------------------
if __name__ == "__main__":
    B, Cin, H, W = 2, 4, 16, 16
    Cfeat, Ncls = 32, 8

    key = jax.random.PRNGKey(0)
    kx, kp = jax.random.split(key)
    x = jax.random.normal(kx, (B, Cin, H, W), jnp.float32)
    params = init_params(kp, Cin, Cfeat, Ncls)

    fwd = jax.jit(functools.partial(custom_deeplabv3_forward))
    result = fwd(params, x)
    out = jax.block_until_ready(result["out"])

    assert out.shape == (B, Ncls, H, W), out.shape
    assert out.dtype == jnp.float32
    assert bool(jnp.all(jnp.isfinite(out)))
    print("KERNEL_OK")
</pallas_src>

<mosaic_0001>
module attributes {stable_mosaic.version = 11 : i64} {
  func.func @_fused_conv_head_kernel(%arg0: i32, %arg1: memref<16x40xbf16, #tpu.memory_space<vmem>>, %arg2: memref<40x128xbf16, #tpu.memory_space<vmem>>, %arg3: memref<1x128xf32, #tpu.memory_space<vmem>>, %arg4: memref<128x128xbf16, #tpu.memory_space<vmem>>, %arg5: memref<1x128xf32, #tpu.memory_space<vmem>>, %arg6: memref<16x128xbf16, #tpu.memory_space<vmem>>) attributes {dimension_semantics = [#tpu.dimension_semantics<parallel>], iteration_bounds = array<i64: 2>, scalar_prefetch = 0 : i64, scratch_operands = 0 : i64, tpu.core_type = #tpu.core_type<tc>, window_params = [{transform_indices = @transform_0, window_bounds = array<i64: 16, 40>}, {pipeline_mode = #tpu.pipeline_mode<synchronous>, transform_indices = @transform_1, window_bounds = array<i64: 40, 128>}, {pipeline_mode = #tpu.pipeline_mode<synchronous>, transform_indices = @transform_2, window_bounds = array<i64: 1, 128>}, {pipeline_mode = #tpu.pipeline_mode<synchronous>, transform_indices = @transform_3, window_bounds = array<i64: 128, 128>}, {pipeline_mode = #tpu.pipeline_mode<synchronous>, transform_indices = @transform_4, window_bounds = array<i64: 1, 128>}, {transform_indices = @transform_5, window_bounds = array<i64: 16, 128>}]} {
    %c0 = arith.constant 0 : index
    %c0_0 = arith.constant 0 : index
    %0 = vector.load %arg1[%c0, %c0_0] : memref<16x40xbf16, #tpu.memory_space<vmem>>, vector<16x40xbf16>
    %c0_1 = arith.constant 0 : index
    %c0_2 = arith.constant 0 : index
    %1 = vector.load %arg2[%c0_1, %c0_2] : memref<40x128xbf16, #tpu.memory_space<vmem>>, vector<40x128xbf16>
    %cst = arith.constant dense<0.000000e+00> : vector<16x128xf32>
    %2 = tpu.matmul %0, %1, %cst {dimension_numbers = #tpu.dot_dimension_numbers<[1], [0], [0], [1], [0, 0, 1, 1], [], []>} : vector<16x40xbf16>, vector<40x128xbf16>, vector<16x128xf32> -> vector<16x128xf32>
    %c0_3 = arith.constant 0 : index
    %c0_4 = arith.constant 0 : index
    %3 = vector.load %arg3[%c0_3, %c0_4] : memref<1x128xf32, #tpu.memory_space<vmem>>, vector<1x128xf32>
    %4 = vector.broadcast %3 : vector<1x128xf32> to vector<16x128xf32>
    %5 = arith.addf %2, %4 : vector<16x128xf32>
    %cst_5 = arith.constant 0.000000e+00 : f32
    %6 = vector.broadcast %cst_5 : f32 to vector<16x128xf32>
    %7 = arith.maximumf %5, %6 : vector<16x128xf32>
    %8 = arith.truncf %7 : vector<16x128xf32> to vector<16x128xbf16>
    %c0_6 = arith.constant 0 : index
    %c0_7 = arith.constant 0 : index
    %9 = vector.load %arg4[%c0_6, %c0_7] : memref<128x128xbf16, #tpu.memory_space<vmem>>, vector<128x128xbf16>
    %cst_8 = arith.constant dense<0.000000e+00> : vector<16x128xf32>
    %10 = tpu.matmul %8, %9, %cst_8 {dimension_numbers = #tpu.dot_dimension_numbers<[1], [0], [0], [1], [0, 0, 1, 1], [], []>} : vector<16x128xbf16>, vector<128x128xbf16>, vector<16x128xf32> -> vector<16x128xf32>
    %c0_9 = arith.constant 0 : index
    %c0_10 = arith.constant 0 : index
    %11 = vector.load %arg5[%c0_9, %c0_10] : memref<1x128xf32, #tpu.memory_space<vmem>>, vector<1x128xf32>
    %12 = vector.broadcast %11 : vector<1x128xf32> to vector<16x128xf32>
    %13 = arith.addf %10, %12 : vector<16x128xf32>
    %14 = arith.truncf %13 : vector<16x128xf32> to vector<16x128xbf16>
    %c0_11 = arith.constant 0 : index
    %c0_12 = arith.constant 0 : index
    %15 = vector.load %arg6[%c0_11, %c0_12] : memref<16x128xbf16, #tpu.memory_space<vmem>>, vector<16x128xbf16>
    tpu.vector_store %arg6[%c0_11, %c0_12], %14 {strides = array<i32>} : memref<16x128xbf16, #tpu.memory_space<vmem>>, vector<16x128xbf16>,
    return
  }
  func.func @transform_0(%arg0: i32) -> (i32, i32) {
    %c0_i32 = arith.constant 0 : i32
    %c0_i32_0 = arith.constant 0 : i32
    return %arg0, %c0_i32 : i32, i32
  }
  func.func @transform_1(%arg0: i32) -> (i32, i32) {
    %c0_i32 = arith.constant 0 : i32
    %c0_i32_0 = arith.constant 0 : i32
    %c0_i32_1 = arith.constant 0 : i32
    return %c0_i32, %c0_i32_0 : i32, i32
  }
  func.func @transform_2(%arg0: i32) -> (i32, i32) {
    %c0_i32 = arith.constant 0 : i32
    %c0_i32_0 = arith.constant 0 : i32
    %c0_i32_1 = arith.constant 0 : i32
    return %c0_i32, %c0_i32_0 : i32, i32
  }
  func.func @transform_3(%arg0: i32) -> (i32, i32) {
    %c0_i32 = arith.constant 0 : i32
    %c0_i32_0 = arith.constant 0 : i32
    %c0_i32_1 = arith.constant 0 : i32
    return %c0_i32, %c0_i32_0 : i32, i32
  }
  func.func @transform_4(%arg0: i32) -> (i32, i32) {
    %c0_i32 = arith.constant 0 : i32
    %c0_i32_0 = arith.constant 0 : i32
    %c0_i32_1 = arith.constant 0 : i32
    return %c0_i32, %c0_i32_0 : i32, i32
  }
  func.func @transform_5(%arg0: i32) -> (i32, i32) {
    %c0_i32 = arith.constant 0 : i32
    %c0_i32_0 = arith.constant 0 : i32
    return %arg0, %c0_i32 : i32, i32
  }
}

module attributes {stable_mosaic.version = 11 : i64} {
  func.func @_bilinear_kernel(%arg0: i32, %arg1: memref<8x8x8xbf16, #tpu.memory_space<vmem>>, %arg2: memref<16x8xbf16, #tpu.memory_space<vmem>>, %arg3: memref<8x16xbf16, #tpu.memory_space<vmem>>, %arg4: memref<128x16xf32, #tpu.memory_space<vmem>>, %arg5: memref<128x8xbf16, #tpu.memory_space<vmem>>) attributes {dimension_semantics = [#tpu.dimension_semantics<parallel>], iteration_bounds = array<i64: 2>, scalar_prefetch = 0 : i64, scratch_operands = 1 : i64, tpu.core_type = #tpu.core_type<tc>, window_params = [{transform_indices = @transform_0, window_bounds = array<i64: 8, 8, 8>}, {pipeline_mode = #tpu.pipeline_mode<synchronous>, transform_indices = @transform_1, window_bounds = array<i64: 16, 8>}, {pipeline_mode = #tpu.pipeline_mode<synchronous>, transform_indices = @transform_2, window_bounds = array<i64: 8, 16>}, {transform_indices = @transform_3, window_bounds = array<i64: 128, 16>}]} {
    %c0 = arith.constant 0 : index
    %c0_0 = arith.constant 0 : index
    %0 = vector.load %arg2[%c0, %c0_0] : memref<16x8xbf16, #tpu.memory_space<vmem>>, vector<16x8xbf16>
    %c0_i32 = arith.constant 0 : i32
    %c16_i32 = arith.constant 16 : i32
    %1 = arith.muli %c0_i32, %c16_i32 : i32
    %2 = tpu.assume_multiple %1, 8 : i32
    %3 = arith.index_cast %c0_i32 : i32 to index
    %c0_1 = arith.constant 0 : index
    %c0_2 = arith.constant 0 : index
    %4 = vector.load %arg1[%3, %c0_1, %c0_2] : memref<8x8x8xbf16, #tpu.memory_space<vmem>>, vector<1x8x8xbf16>
    %5 = vector.shape_cast %4 : vector<1x8x8xbf16> to vector<8x8xbf16>
    %cst = arith.constant dense<0.000000e+00> : vector<16x8xf32>
    %6 = tpu.matmul %0, %5, %cst {dimension_numbers = #tpu.dot_dimension_numbers<[1], [0], [0], [1], [0, 0, 1, 1], [], []>} : vector<16x8xbf16>, vector<8x8xbf16>, vector<16x8xf32> -> vector<16x8xf32>
    %7 = arith.truncf %6 : vector<16x8xf32> to vector<16x8xbf16>
    %8 = arith.index_cast %2 : i32 to index
    %c0_3 = arith.constant 0 : index
    %9 = vector.load %arg5[%8, %c0_3] : memref<128x8xbf16, #tpu.memory_space<vmem>>, vector<16x8xbf16>
    tpu.vector_store %arg5[%8, %c0_3], %7 {strides = array<i32>} : memref<128x8xbf16, #tpu.memory_space<vmem>>, vector<16x8xbf16>,
    %c1_i32 = arith.constant 1 : i32
    %c16_i32_4 = arith.constant 16 : i32
    %10 = arith.muli %c1_i32, %c16_i32_4 : i32
    %11 = tpu.assume_multiple %10, 8 : i32
    %12 = arith.index_cast %c1_i32 : i32 to index
    %c0_5 = arith.constant 0 : index
    %c0_6 = arith.constant 0 : index
    %13 = vector.load %arg1[%12, %c0_5, %c0_6] : memref<8x8x8xbf16, #tpu.memory_space<vmem>>, vector<1x8x8xbf16>
    %14 = vector.shape_cast %13 : vector<1x8x8xbf16> to vector<8x8xbf16>
    %cst_7 = arith.constant dense<0.000000e+00> : vector<16x8xf32>
    %15 = tpu.matmul %0, %14, %cst_7 {dimension_numbers = #tpu.dot_dimension_numbers<[1], [0], [0], [1], [0, 0, 1, 1], [], []>} : vector<16x8xbf16>, vector<8x8xbf16>, vector<16x8xf32> -> vector<16x8xf32>
    %16 = arith.truncf %15 : vector<16x8xf32> to vector<16x8xbf16>
    %17 = arith.index_cast %11 : i32 to index
    %c0_8 = arith.constant 0 : index
    %18 = vector.load %arg5[%17, %c0_8] : memref<128x8xbf16, #tpu.memory_space<vmem>>, vector<16x8xbf16>
    tpu.vector_store %arg5[%17, %c0_8], %16 {strides = array<i32>} : memref<128x8xbf16, #tpu.memory_space<vmem>>, vector<16x8xbf16>,
    %c2_i32 = arith.constant 2 : i32
    %c16_i32_9 = arith.constant 16 : i32
    %19 = arith.muli %c2_i32, %c16_i32_9 : i32
    %20 = tpu.assume_multiple %19, 8 : i32
    %21 = arith.index_cast %c2_i32 : i32 to index
    %c0_10 = arith.constant 0 : index
    %c0_11 = arith.constant 0 : index
    %22 = vector.load %arg1[%21, %c0_10, %c0_11] : memref<8x8x8xbf16, #tpu.memory_space<vmem>>, vector<1x8x8xbf16>
    %23 = vector.shape_cast %22 : vector<1x8x8xbf16> to vector<8x8xbf16>
    %cst_12 = arith.constant dense<0.000000e+00> : vector<16x8xf32>
    %24 = tpu.matmul %0, %23, %cst_12 {dimension_numbers = #tpu.dot_dimension_numbers<[1], [0], [0], [1], [0, 0, 1, 1], [], []>} : vector<16x8xbf16>, vector<8x8xbf16>, vector<16x8xf32> -> vector<16x8xf32>
    %25 = arith.truncf %24 : vector<16x8xf32> to vector<16x8xbf16>
    %26 = arith.index_cast %20 : i32 to index
    %c0_13 = arith.constant 0 : index
    %27 = vector.load %arg5[%26, %c0_13] : memref<128x8xbf16, #tpu.memory_space<vmem>>, vector<16x8xbf16>
    tpu.vector_store %arg5[%26, %c0_13], %25 {strides = array<i32>} : memref<128x8xbf16, #tpu.memory_space<vmem>>, vector<16x8xbf16>,
    %c3_i32 = arith.constant 3 : i32
    %c16_i32_14 = arith.constant 16 : i32
    %28 = arith.muli %c3_i32, %c16_i32_14 : i32
    %29 = tpu.assume_multiple %28, 8 : i32
    %30 = arith.index_cast %c3_i32 : i32 to index
    %c0_15 = arith.constant 0 : index
    %c0_16 = arith.constant 0 : index
    %31 = vector.load %arg1[%30, %c0_15, %c0_16] : memref<8x8x8xbf16, #tpu.memory_space<vmem>>, vector<1x8x8xbf16>
    %32 = vector.shape_cast %31 : vector<1x8x8xbf16> to vector<8x8xbf16>
    %cst_17 = arith.constant dense<0.000000e+00> : vector<16x8xf32>
    %33 = tpu.matmul %0, %32, %cst_17 {dimension_numbers = #tpu.dot_dimension_numbers<[1], [0], [0], [1], [0, 0, 1, 1], [], []>} : vector<16x8xbf16>, vector<8x8xbf16>, vector<16x8xf32> -> vector<16x8xf32>
    %34 = arith.truncf %33 : vector<16x8xf32> to vector<16x8xbf16>
    %35 = arith.index_cast %29 : i32 to index
    %c0_18 = arith.constant 0 : index
    %36 = vector.load %arg5[%35, %c0_18] : memref<128x8xbf16, #tpu.memory_space<vmem>>, vector<16x8xbf16>
    tpu.vector_store %arg5[%35, %c0_18], %34 {strides = array<i32>} : memref<128x8xbf16, #tpu.memory_space<vmem>>, vector<16x8xbf16>,
    %c4_i32 = arith.constant 4 : i32
    %c16_i32_19 = arith.constant 16 : i32
    %37 = arith.muli %c4_i32, %c16_i32_19 : i32
    %38 = tpu.assume_multiple %37, 8 : i32
    %39 = arith.index_cast %c4_i32 : i32 to index
    %c0_20 = arith.constant 0 : index
    %c0_21 = arith.constant 0 : index
    %40 = vector.load %arg1[%39, %c0_20, %c0_21] : memref<8x8x8xbf16, #tpu.memory_space<vmem>>, vector<1x8x8xbf16>
    %41 = vector.shape_cast %40 : vector<1x8x8xbf16> to vector<8x8xbf16>
    %cst_22 = arith.constant dense<0.000000e+00> : vector<16x8xf32>
    %42 = tpu.matmul %0, %41, %cst_22 {dimension_numbers = #tpu.dot_dimension_numbers<[1], [0], [0], [1], [0, 0, 1, 1], [], []>} : vector<16x8xbf16>, vector<8x8xbf16>, vector<16x8xf32> -> vector<16x8xf32>
    %43 = arith.truncf %42 : vector<16x8xf32> to vector<16x8xbf16>
    %44 = arith.index_cast %38 : i32 to index
    %c0_23 = arith.constant 0 : index
    %45 = vector.load %arg5[%44, %c0_23] : memref<128x8xbf16, #tpu.memory_space<vmem>>, vector<16x8xbf16>
    tpu.vector_store %arg5[%44, %c0_23], %43 {strides = array<i32>} : memref<128x8xbf16, #tpu.memory_space<vmem>>, vector<16x8xbf16>,
    %c5_i32 = arith.constant 5 : i32
    %c16_i32_24 = arith.constant 16 : i32
    %46 = arith.muli %c5_i32, %c16_i32_24 : i32
    %47 = tpu.assume_multiple %46, 8 : i32
    %48 = arith.index_cast %c5_i32 : i32 to index
    %c0_25 = arith.constant 0 : index
    %c0_26 = arith.constant 0 : index
    %49 = vector.load %arg1[%48, %c0_25, %c0_26] : memref<8x8x8xbf16, #tpu.memory_space<vmem>>, vector<1x8x8xbf16>
    %50 = vector.shape_cast %49 : vector<1x8x8xbf16> to vector<8x8xbf16>
    %cst_27 = arith.constant dense<0.000000e+00> : vector<16x8xf32>
    %51 = tpu.matmul %0, %50, %cst_27 {dimension_numbers = #tpu.dot_dimension_numbers<[1], [0], [0], [1], [0, 0, 1, 1], [], []>} : vector<16x8xbf16>, vector<8x8xbf16>, vector<16x8xf32> -> vector<16x8xf32>
    %52 = arith.truncf %51 : vector<16x8xf32> to vector<16x8xbf16>
    %53 = arith.index_cast %47 : i32 to index
    %c0_28 = arith.constant 0 : index
    %54 = vector.load %arg5[%53, %c0_28] : memref<128x8xbf16, #tpu.memory_space<vmem>>, vector<16x8xbf16>
    tpu.vector_store %arg5[%53, %c0_28], %52 {strides = array<i32>} : memref<128x8xbf16, #tpu.memory_space<vmem>>, vector<16x8xbf16>,
    %c6_i32 = arith.constant 6 : i32
    %c16_i32_29 = arith.constant 16 : i32
    %55 = arith.muli %c6_i32, %c16_i32_29 : i32
    %56 = tpu.assume_multiple %55, 8 : i32
    %57 = arith.index_cast %c6_i32 : i32 to index
    %c0_30 = arith.constant 0 : index
    %c0_31 = arith.constant 0 : index
    %58 = vector.load %arg1[%57, %c0_30, %c0_31] : memref<8x8x8xbf16, #tpu.memory_space<vmem>>, vector<1x8x8xbf16>
    %59 = vector.shape_cast %58 : vector<1x8x8xbf16> to vector<8x8xbf16>
    %cst_32 = arith.constant dense<0.000000e+00> : vector<16x8xf32>
    %60 = tpu.matmul %0, %59, %cst_32 {dimension_numbers = #tpu.dot_dimension_numbers<[1], [0], [0], [1], [0, 0, 1, 1], [], []>} : vector<16x8xbf16>, vector<8x8xbf16>, vector<16x8xf32> -> vector<16x8xf32>
    %61 = arith.truncf %60 : vector<16x8xf32> to vector<16x8xbf16>
    %62 = arith.index_cast %56 : i32 to index
    %c0_33 = arith.constant 0 : index
    %63 = vector.load %arg5[%62, %c0_33] : memref<128x8xbf16, #tpu.memory_space<vmem>>, vector<16x8xbf16>
    tpu.vector_store %arg5[%62, %c0_33], %61 {strides = array<i32>} : memref<128x8xbf16, #tpu.memory_space<vmem>>, vector<16x8xbf16>,
    %c7_i32 = arith.constant 7 : i32
    %c16_i32_34 = arith.constant 16 : i32
    %64 = arith.muli %c7_i32, %c16_i32_34 : i32
    %65 = tpu.assume_multiple %64, 8 : i32
    %66 = arith.index_cast %c7_i32 : i32 to index
    %c0_35 = arith.constant 0 : index
    %c0_36 = arith.constant 0 : index
    %67 = vector.load %arg1[%66, %c0_35, %c0_36] : memref<8x8x8xbf16, #tpu.memory_space<vmem>>, vector<1x8x8xbf16>
    %68 = vector.shape_cast %67 : vector<1x8x8xbf16> to vector<8x8xbf16>
    %cst_37 = arith.constant dense<0.000000e+00> : vector<16x8xf32>
    %69 = tpu.matmul %0, %68, %cst_37 {dimension_numbers = #tpu.dot_dimension_numbers<[1], [0], [0], [1], [0, 0, 1, 1], [], []>} : vector<16x8xbf16>, vector<8x8xbf16>, vector<16x8xf32> -> vector<16x8xf32>
    %70 = arith.truncf %69 : vector<16x8xf32> to vector<16x8xbf16>
    %71 = arith.index_cast %65 : i32 to index
    %c0_38 = arith.constant 0 : index
    %72 = vector.load %arg5[%71, %c0_38] : memref<128x8xbf16, #tpu.memory_space<vmem>>, vector<16x8xbf16>
    tpu.vector_store %arg5[%71, %c0_38], %70 {strides = array<i32>} : memref<128x8xbf16, #tpu.memory_space<vmem>>, vector<16x8xbf16>,
    %c8_i32 = arith.constant 8 : i32
    %c0_39 = arith.constant 0 : index
    %c0_40 = arith.constant 0 : index
    %73 = vector.load %arg5[%c0_39, %c0_40] : memref<128x8xbf16, #tpu.memory_space<vmem>>, vector<128x8xbf16>
    %c0_41 = arith.constant 0 : index
    %c0_42 = arith.constant 0 : index
    %74 = vector.load %arg3[%c0_41, %c0_42] : memref<8x16xbf16, #tpu.memory_space<vmem>>, vector<8x16xbf16>
    %cst_43 = arith.constant dense<0.000000e+00> : vector<128x16xf32>
    %75 = tpu.matmul %73, %74, %cst_43 {dimension_numbers = #tpu.dot_dimension_numbers<[1], [0], [0], [1], [0, 0, 1, 1], [], []>} : vector<128x8xbf16>, vector<8x16xbf16>, vector<128x16xf32> -> vector<128x16xf32>
    %c0_44 = arith.constant 0 : index
    %c0_45 = arith.constant 0 : index
    %76 = vector.load %arg4[%c0_44, %c0_45] : memref<128x16xf32, #tpu.memory_space<vmem>>, vector<128x16xf32>
    tpu.vector_store %arg4[%c0_44, %c0_45], %75 {strides = array<i32>} : memref<128x16xf32, #tpu.memory_space<vmem>>, vector<128x16xf32>,
    return
  }
  func.func @transform_0(%arg0: i32) -> (i32, i32, i32) {
    %c0_i32 = arith.constant 0 : i32
    %c0_i32_0 = arith.constant 0 : i32
    %c0_i32_1 = arith.constant 0 : i32
    return %arg0, %c0_i32, %c0_i32_0 : i32, i32, i32
  }
  func.func @transform_1(%arg0: i32) -> (i32, i32) {
    %c0_i32 = arith.constant 0 : i32
    %c0_i32_0 = arith.constant 0 : i32
    %c0_i32_1 = arith.constant 0 : i32
    return %c0_i32, %c0_i32_0 : i32, i32
  }
  func.func @transform_2(%arg0: i32) -> (i32, i32) {
    %c0_i32 = arith.constant 0 : i32
    %c0_i32_0 = arith.constant 0 : i32
    %c0_i32_1 = arith.constant 0 : i32
    return %c0_i32, %c0_i32_0 : i32, i32
  }
  func.func @transform_3(%arg0: i32) -> (i32, i32) {
    %c0_i32 = arith.constant 0 : i32
    %c0_i32_0 = arith.constant 0 : i32
    return %arg0, %c0_i32 : i32, i32
  }
}

</mosaic_0001>

<llo_original>
// kernel: custom_deeplabv3_forward.2
$region0: #{custom_deeplabv3_forward.2}
  #allocation0 [shape = 'u32[]', space=smem, size = 0x4, offset = 0x4, fixed_abs, tag = 'smem constant byte address 0x4 - core index']
  #allocation1 [shape = 'u32[144,128]{1,0:T(1,128)}', space=vmem, size = 0x12000, scoped, tag = 'internal scratch']
  %s0 = inlined_call_operand.vmem [shape: bf16[32,40], index: 0, kind: input, shape index: {}]
  %s1 = inlined_call_operand.vmem [shape: bf16[40,128], index: 1, kind: input, shape index: {}]
  %s2 = inlined_call_operand.vmem [shape: f32[1,128], index: 2, kind: input, shape index: {}]
  %s3 = inlined_call_operand.vmem [shape: bf16[128,128], index: 3, kind: input, shape index: {}]
  %s4 = inlined_call_operand.vmem [shape: f32[1,128], index: 4, kind: input, shape index: {}]
  %s5 = inlined_call_operand.vmem [shape: bf16[32,128], index: 5, kind: output, shape index: {}]
  %s6 = sld [smem:[#allocation0]]
  $region53: #{custom_deeplabv3_forward.2} parent=0
    _
  %s8 = ssub.s32 1, %s6
  %s9 = scalar_select 0, %s8, %s6
  loop: start=0, step=1, limit=4
  $region2: #{custom_deeplabv3_forward.2} parent=0 // loop_pre_header
    _
  $region3: #{custom_deeplabv3_forward.2} parent=0 // loop_header
    %s11 = sphi 0, %s15
    %p12 = scmp.ge.s32.totalorder %s11, 4
    %s21 = sphi 0, %s23
    %s24 = sphi 0, %s21
    %s25 = sphi 0, %s24
    %s41 = sphi 0, %s25
    %s45 = sphi 0, %s45
    %s47 = sphi 0, %s45
    %s48 = sphi 0, %s47
    %s62 = sphi 0, %s48
    %s66 = sphi 0, %s66
    %s68 = sphi 0, %s66
    %s69 = sphi 0, %s68
    %s83 = sphi 0, %s69
    %s87 = sphi 0, %s87
    %s89 = sphi 0, %s87
    %s90 = sphi 0, %s89
    %s104 = sphi 0, %s90
    %s108 = sphi 0, %s108
    %s110 = sphi 0, %s108
    %s111 = sphi 0, %s110
    %s125 = sphi 0, %s111
    %s131 = sphi 0, %s133
    %s134 = sphi 0, %s131
    %s135 = sphi 0, %s134
    %s151 = sphi 0, %s135
  $region4: #{custom_deeplabv3_forward.2} parent=0 // loop_header_branch
    %14 = sbr.rel (%p12) target = $region8
  $region5: #{custom_deeplabv3_forward.2} parent=0 // loop_body
    %s16 = ssub.s32 %s11, 1
    %s17 = ssub.s32 %s11, 2
    %s18 = sadd.s32 %s11, 1
    %s19 = ssub.s32 %s11, %s18
    %p20 = scmp.eq.s32.totalorder %s19, 0
    %s22 = sadd.s32 %s21, 1
    %s23 = scalar_select %p20, %s21, %s22
    %p26 = pneg %p20
    %p27 = scmp.eq.s32.totalorder %s11, 1
    %p28 = por %p26, %p27
    %p29 = scmp.ne.s32.totalorder %s21, %s24
    %p30 = scmp.eq.s32.totalorder %s11, 0
    %p31 = por %p29, %p30
    %p32 = scmp.ne.s32.totalorder %s21, %s24
    %p33 = scmp.eq.s32.totalorder %s16, 1
    %p34 = por %p32, %p33
    %p35 = scmp.ne.s32.totalorder %s24, %s25
    %p36 = scmp.eq.s32.totalorder %s16, 0
    %p37 = por %p35, %p36
    %p38 = scmp.ne.s32.totalorder %s24, %s25
    %p39 = scmp.eq.s32.totalorder %s17, 1
    %p40 = por %p38, %p39
    %p42 = scmp.ne.s32.totalorder %s25, %s41
    %p43 = scmp.eq.s32.totalorder %s17, 0
    %p44 = por %p42, %p43
    %s46 = sadd.s32 %s45, 1
    %p49 = scmp.eq.s32.totalorder %s11, 1
    %p50 = scmp.ne.s32.totalorder %s45, %s47
    %p51 = scmp.eq.s32.totalorder %s11, 0
    %p52 = por %p50, %p51
    %p53 = scmp.ne.s32.totalorder %s45, %s47
    %p54 = scmp.eq.s32.totalorder %s16, 1
    %p55 = por %p53, %p54
    %p56 = scmp.ne.s32.totalorder %s47, %s48
    %p57 = scmp.eq.s32.totalorder %s16, 0
    %p58 = por %p56, %p57
    %p59 = scmp.ne.s32.totalorder %s47, %s48
    %p60 = scmp.eq.s32.totalorder %s17, 1
    %p61 = por %p59, %p60
    %p63 = scmp.ne.s32.totalorder %s48, %s62
    %p64 = scmp.eq.s32.totalorder %s17, 0
    %p65 = por %p63, %p64
    %s67 = sadd.s32 %s66, 1
    %p70 = scmp.eq.s32.totalorder %s11, 1
    %p71 = scmp.ne.s32.totalorder %s66, %s68
    %p72 = scmp.eq.s32.totalorder %s11, 0
    %p73 = por %p71, %p72
    %p74 = scmp.ne.s32.totalorder %s66, %s68
    %p75 = scmp.eq.s32.totalorder %s16, 1
    %p76 = por %p74, %p75
    %p77 = scmp.ne.s32.totalorder %s68, %s69
    %p78 = scmp.eq.s32.totalorder %s16, 0
    %p79 = por %p77, %p78
    %p80 = scmp.ne.s32.totalorder %s68, %s69
    %p81 = scmp.eq.s32.totalorder %s17, 1
    %p82 = por %p80, %p81
    %p84 = scmp.ne.s32.totalorder %s69, %s83
    %p85 = scmp.eq.s32.totalorder %s17, 0
    %p86 = por %p84, %p85
    %s88 = sadd.s32 %s87, 1
    %p91 = scmp.eq.s32.totalorder %s11, 1
    %p92 = scmp.ne.s32.totalorder %s87, %s89
    %p93 = scmp.eq.s32.totalorder %s11, 0
    %p94 = por %p92, %p93
    %p95 = scmp.ne.s32.totalorder %s87, %s89
    %p96 = scmp.eq.s32.totalorder %s16, 1
    %p97 = por %p95, %p96
    %p98 = scmp.ne.s32.totalorder %s89, %s90
    %p99 = scmp.eq.s32.totalorder %s16, 0
    %p100 = por %p98, %p99
    %p101 = scmp.ne.s32.totalorder %s89, %s90
    %p102 = scmp.eq.s32.totalorder %s17, 1
    %p103 = por %p101, %p102
    %p105 = scmp.ne.s32.totalorder %s90, %s104
    %p106 = scmp.eq.s32.totalorder %s17, 0
    %p107 = por %p105, %p106
    %s109 = sadd.s32 %s108, 1
    %p112 = scmp.eq.s32.totalorder %s11, 1
    %p113 = scmp.ne.s32.totalorder %s108, %s110
    %p114 = scmp.eq.s32.totalorder %s11, 0
    %p115 = por %p113, %p114
    %p116 = scmp.ne.s32.totalorder %s108, %s110
    %p117 = scmp.eq.s32.totalorder %s16, 1
    %p118 = por %p116, %p117
    %p119 = scmp.ne.s32.totalorder %s110, %s111
    %p120 = scmp.eq.s32.totalorder %s16, 0
    %p121 = por %p119, %p120
    %p122 = scmp.ne.s32.totalorder %s110, %s111
    %p123 = scmp.eq.s32.totalorder %s17, 1
    %p124 = por %p122, %p123
    %p126 = scmp.ne.s32.totalorder %s111, %s125
    %p127 = scmp.eq.s32.totalorder %s17, 0
    %p128 = por %p126, %p127
    %s129 = ssub.s32 %s11, %s18
    %p130 = scmp.eq.s32.totalorder %s129, 0
    %s132 = sadd.s32 %s131, 1
    %s133 = scalar_select %p130, %s131, %s132
    %p136 = pneg %p130
    %p137 = scmp.eq.s32.totalorder %s11, 1
    %p138 = por %p136, %p137
    %p139 = scmp.ne.s32.totalorder %s131, %s134
    %p140 = scmp.eq.s32.totalorder %s11, 0
    %p141 = por %p139, %p140
    %p142 = scmp.ne.s32.totalorder %s131, %s134
    %p143 = scmp.eq.s32.totalorder %s16, 1
    %p144 = por %p142, %p143
    %p145 = scmp.ne.s32.totalorder %s134, %s135
    %p146 = scmp.eq.s32.totalorder %s16, 0
    %p147 = por %p145, %p146
    %p148 = scmp.ne.s32.totalorder %s134, %s135
    %p149 = scmp.eq.s32.totalorder %s17, 1
    %p150 = por %p148, %p149
    %p152 = scmp.ne.s32.totalorder %s135, %s151
    %p153 = scmp.eq.s32.totalorder %s17, 0
    %p154 = por %p152, %p153
    %p155 = scmp.le.s32.totalorder 1, %s11
    %p156 = scmp.lt.s32.totalorder %s11, 3
    %p157 = pnand %p155, %p156
    %p158 = pneg %p157
    // Predicated region
    $region9: #{custom_deeplabv3_forward.2} parent=5 // pred_check
      _
    $region10: #{custom_deeplabv3_forward.2} parent=5 // pred_check_branch
      %160 = sbr.rel (%p157) target = $region12
    $region11: #{custom_deeplabv3_forward.2} parent=5 // pred_region
      %s161 = ssub.s32 %s11, 1
      // Predicated region
      $region13: #{custom_deeplabv3_forward.2} parent=11 // pred_check
        %p162 = pneg %p58
      $region14: #{custom_deeplabv3_forward.2} parent=11 // pred_check_branch
        %164 = sbr.rel (%p162) target = $region16
      $region15: #{custom_deeplabv3_forward.2} parent=11 // pred_region
        _
      $region16: #{custom_deeplabv3_forward.2} parent=11 // pred_fallthru
        _
      // Predicated region
      $region17: #{custom_deeplabv3_forward.2} parent=11 // pred_check
        %p165 = pneg %p79
      $region18: #{custom_deeplabv3_forward.2} parent=11 // pred_check_branch
        %167 = sbr.rel (%p165) target = $region20
      $region19: #{custom_deeplabv3_forward.2} parent=11 // pred_region
        _
      $region20: #{custom_deeplabv3_forward.2} parent=11 // pred_fallthru
        _
      // Predicated region
      $region21: #{custom_deeplabv3_forward.2} parent=11 // pred_check
        %p168 = pneg %p100
      $region22: #{custom_deeplabv3_forward.2} parent=11 // pred_check_branch
        %170 = sbr.rel (%p168) target = $region24
      $region23: #{custom_deeplabv3_forward.2} parent=11 // pred_region
        _
      $region24: #{custom_deeplabv3_forward.2} parent=11 // pred_fallthru
        _
      // Predicated region
      $region25: #{custom_deeplabv3_forward.2} parent=11 // pred_check
        %p171 = pneg %p121
      $region26: #{custom_deeplabv3_forward.2} parent=11 // pred_check_branch
        %173 = sbr.rel (%p171) target = $region28
      $region27: #{custom_deeplabv3_forward.2} parent=11 // pred_region
        _
      $region28: #{custom_deeplabv3_forward.2} parent=11 // pred_fallthru
        _
    $region12: #{custom_deeplabv3_forward.2} parent=5 // pred_fallthru
      _
    %p174 = scmp.lt.s32.totalorder %s11, 2
    // Predicated region
    $region29: #{custom_deeplabv3_forward.2} parent=5 // pred_check
      %p175 = pneg %p174
    $region30: #{custom_deeplabv3_forward.2} parent=5 // pred_check_branch
      %177 = sbr.rel (%p175) target = $region32
    $region31: #{custom_deeplabv3_forward.2} parent=5 // pred_region
      // Predicated region
      $region33: #{custom_deeplabv3_forward.2} parent=31 // pred_check
        %p178 = pneg %p31
      $region34: #{custom_deeplabv3_forward.2} parent=31 // pred_check_branch
        %180 = sbr.rel (%p178) target = $region36
      $region35: #{custom_deeplabv3_forward.2} parent=31 // pred_region
        %s181 = smul.u32 2, %s11
        %p182 = scmp.lt.s32.totalorder %s181, 3
        %s183 = scalar_select %p182, %s181, 3
        %s184 = smul.addr %s183, 4
        %s185 = scalar_lea.vmem %s0, %s184
        %s186 = smul.u32 2, %s11
      $region36: #{custom_deeplabv3_forward.2} parent=31 // pred_fallthru
        _
    $region32: #{custom_deeplabv3_forward.2} parent=5 // pred_fallthru
      _
    %p187 = scmp.le.s32.totalorder 1, %s11
    %p188 = scmp.lt.s32.totalorder %s11, 3
    %p189 = pnand %p187, %p188
    %p190 = pneg %p189
    // Predicated region
    $region37: #{custom_deeplabv3_forward.2} parent=5 // pred_check
      _
    $region38: #{custom_deeplabv3_forward.2} parent=5 // pred_check_branch
      %192 = sbr.rel (%p189) target = $region40
    $region39: #{custom_deeplabv3_forward.2} parent=5 // pred_region
      %s193 = ssub.s32 %s11, 1
      %s194 = smul.u32 2, %s16
      %p195 = scmp.lt.s32.totalorder %s194, 3
      %s196 = scalar_select %p195, %s194, 3
      %s197 = smul.addr %s196, 4
      %s198 = scalar_lea.vmem %s0, %s197
      %p199 = pneg %p37
      %p200 = pneg %p34
      %p201 = pneg %p58
      %p202 = pneg %p55
      %p203 = pneg %p79
      %p204 = pneg %p76
      %p205 = pneg %p100
      %p206 = pneg %p97
      %p207 = pneg %p121
      %p208 = pneg %p118
      %p209 = pneg %p147
      %p210 = pneg %p144
      %s211 = smul.u32 2, %s16
      %p212 = scmp.lt.s32.totalorder %s211, 3
      %s213 = scalar_select %p212, %s211, 3
      %s214 = smul.addr %s213, 4
      %s215 = scalar_lea.vmem %s5, %s214
      %s216 = smul.u32 2, %s16
      %p217 = scmp.lt.s32.totalorder %s216, 3
      %s218 = scalar_select %p217, %s216, 3
      %s219 = smul.addr %s218, 4
      %s220 = scalar_lea.vmem %s0, %s219
      %s221 = smul.u32 2, %s16
      %s222 = smul.u32 2, %s16
      %p223 = scmp.lt.s32.totalorder %s222, 3
      %s224 = scalar_select %p223, %s222, 3
      %s225 = smul.addr %s224, 4
      %s226 = scalar_lea.vmem %s5, %s225
      %s227 = smul.u32 2, %s16
      %v229 = vld [vmem:[%s220] sm:$0xf]
      %v230 = vld [vmem:[%s220 + $0x4] sm:$0xf]
      %v231 = vld [vmem:[%s1] sm:$0xf]
      %v232 = vld [vmem:[%s1 + $0x4] sm:$0xf]
      %v233 = vld [vmem:[%s1 + $0x8] sm:$0xf]
      %v234 = vld [vmem:[%s1 + $0xc] sm:$0xf]
      %v235 = vld [vmem:[%s1 + $0x10] sm:$0xf]
      %v236 = vld [vmem:[%s2] sm:$0x1]
      %v238 = vlaneseq
      %v239 = vshrl.u32 %v238, 7
      %v240 = vsub.s32 0, %v239
      %v241 = vrot.slane %v236, %v240
      %v245 = vunpack.c.l.b16 %v229
      %v246 = vunpack.c.l.b16 %v230
      %v247 = vpack.c.b16 %v246, %v245
      %v253 = vunpack.c.l.b16 %v231
      %v254 = vunpack.c.l.b16 %v232
      %v255 = vunpack.c.l.b16 %v233
      %v256 = vunpack.c.l.b16 %v234
      %v257 = vunpack.c.l.b16 %v235
      %v258 = vpack.c.b16 %v254, %v253
      %v259 = vpack.c.b16 %v256, %v255
      %v260 = vpack.c.b16 %v257, %v257
      %vm263 = vcmask 326656
      %v265 = vsel %vm263, %v247, 0
      %vm267 = vcmask 1043456
      %v269 = vsel %vm267, %v260, 0
      %271 = vmatprep.subr.bf16.mxu0 0
      %272 = vmatpush1.bf16.msra.mxu0 0
      %273 = vmatprep.subr.bf16.mxu0 0
      %274 = vmatpush1.bf16.msra.mxu0 0
      %275 = vmatprep.subr.bf16.mxu0 0
      %276 = vmatpush1.bf16.msra.mxu0 0
      %277 = vmatprep.subr.bf16.mxu0 0
      %278 = vmatpush1.bf16.msra.mxu0 0
      %279 = vmatprep.subr.bf16.mxu0 0
      %280 = vmatpush1.bf16.msra.mxu0 0
      %281 = vmatprep.subr.bf16.mxu0 0
      %282 = vmatpush1.bf16.msra.mxu0 %v269
      %283 = vmatprep.subr.bf16.mxu0 0
      %284 = vmatpush1.bf16.msra.mxu0 %v259
      %285 = vmatprep.subr.bf16.mxu0 0
      %286 = vmatpush1.bf16.msra.mxu0 %v258
      %287 = vmatprep.subr.bf16.mxu0 0
      %288 = vmatpush2.bf16.msra.mxu0 0
      %289 = vmatprep.subr.bf16.mxu0 0
      %290 = vmatpush2.bf16.msra.mxu0 0
      %291 = vmatprep.subr.bf16.mxu0 0
      %292 = vmatpush2.bf16.msra.mxu0 0
      %293 = vmatprep.subr.bf16.mxu0 0
      %294 = vmatpush2.bf16.msra.mxu0 0
      %295 = vmatprep.subr.bf16.mxu0 0
      %296 = vmatpush2.bf16.msra.mxu0 0
      %297 = vmatprep.subr.bf16.mxu0 0
      %298 = vmatpush2.bf16.msra.mxu0 0
      %299 = vmatprep.subr.bf16.mxu0 0
      %300 = vmatpush2.bf16.msra.mxu0 0
      %301 = vmatprep.subr.bf16.mxu0 0
      %302 = vmatpush2.bf16.msra.mxu0 0
      %303 = vmatprep.mubr.bf16.mxu0 0
      %304 = vmatmul.mubr.bf16.gmra.mxu0 %v265
      %v305 = vpop.f32.mrf.mxu0
      %v306 = vadd.f32 %v241, %v305
      %v307 = vpop.f32.mrf.mxu0
      %v308 = vpop.f32.mrf.mxu0
      %v309 = vadd.f32 %v241, %v308
      %v310 = vpop.f32.mrf.mxu0
      %311 = vdwg.mxu0
      %v312 = vmax.f32 %v306, 0.0
      %v313 = vmax.f32 %v309, 0.0
      %v314 = vpack.c.bf16 %v313, %v312
      %v315 = vld [vmem:[%s3] sm:$0xf]
      %v316 = vld [vmem:[%s3 + $0x4] sm:$0xf]
      %v317 = vld [vmem:[%s3 + $0x8] sm:$0xf]
      %v318 = vld [vmem:[%s3 + $0xc] sm:$0xf]
      %v319 = vld [vmem:[%s3 + $0x10] sm:$0xf]
      %v320 = vld [vmem:[%s3 + $0x14] sm:$0xf]
      %v321 = vld [vmem:[%s3 + $0x18] sm:$0xf]
      %v322 = vld [vmem:[%s3 + $0x1c] sm:$0xf]
      %v323 = vld [vmem:[%s3 + $0x20] sm:$0xf]
      %v324 = vld [vmem:[%s3 + $0x24] sm:$0xf]
      %v325 = vld [vmem:[%s3 + $0x28] sm:$0xf]
      %v326 = vld [vmem:[%s3 + $0x2c] sm:$0xf]
      %v327 = vld [vmem:[%s3 + $0x30] sm:$0xf]
      %v328 = vld [vmem:[%s3 + $0x34] sm:$0xf]
      %v329 = vld [vmem:[%s3 + $0x38] sm:$0xf]
      %v330 = vld [vmem:[%s3 + $0x3c] sm:$0xf]
      %v331 = vld [vmem:[%s4] sm:$0x1]
      %v333 = vlaneseq
      %v334 = vshrl.u32 %v333, 7
      %v335 = vsub.s32 0, %v334
      %v336 = vrot.slane %v331, %v335
      %v354 = vunpack.c.l.b16 %v315
      %v355 = vunpack.c.l.b16 %v316
      %v356 = vunpack.c.l.b16 %v317
      %v357 = vunpack.c.l.b16 %v318
      %v358 = vunpack.c.l.b16 %v319
      %v359 = vunpack.c.l.b16 %v320
      %v360 = vunpack.c.l.b16 %v321
      %v361 = vunpack.c.l.b16 %v322
      %v362 = vunpack.c.l.b16 %v323
      %v363 = vunpack.c.l.b16 %v324
      %v364 = vunpack.c.l.b16 %v325
      %v365 = vunpack.c.l.b16 %v326
      %v366 = vunpack.c.l.b16 %v327
      %v367 = vunpack.c.l.b16 %v328
      %v368 = vunpack.c.l.b16 %v329
      %v369 = vunpack.c.l.b16 %v330
      %v370 = vpack.c.b16 %v355, %v354
      %v371 = vpack.c.b16 %v357, %v356
      %v372 = vpack.c.b16 %v359, %v358
      %v373 = vpack.c.b16 %v361, %v360
      %v374 = vpack.c.b16 %v363, %v362
      %v375 = vpack.c.b16 %v365, %v364
      %v376 = vpack.c.b16 %v367, %v366
      %v377 = vpack.c.b16 %v369, %v368
      %386 = vmatprep.subr.bf16.mxu0 0
      %387 = vmatpush1.bf16.msra.mxu0 %v377
      %388 = vmatprep.subr.bf16.mxu0 0
      %389 = vmatpush1.bf16.msra.mxu0 %v376
      %390 = vmatprep.subr.bf16.mxu0 0
      %391 = vmatpush1.bf16.msra.mxu0 %v375
      %392 = vmatprep.subr.bf16.mxu0 0
      %393 = vmatpush1.bf16.msra.mxu0 %v374
      %394 = vmatprep.subr.bf16.mxu0 0
      %395 = vmatpush1.bf16.msra.mxu0 %v373
      %396 = vmatprep.subr.bf16.mxu0 0
      %397 = vmatpush1.bf16.msra.mxu0 %v372
      %398 = vmatprep.subr.bf16.mxu0 0
      %399 = vmatpush1.bf16.msra.mxu0 %v371
      %400 = vmatprep.subr.bf16.mxu0 0
      %401 = vmatpush1.bf16.msra.mxu0 %v370
      %402 = vmatprep.subr.bf16.mxu0 0
      %403 = vmatpush2.bf16.msra.mxu0 0
      %404 = vmatprep.subr.bf16.mxu0 0
      %405 = vmatpush2.bf16.msra.mxu0 0
      %406 = vmatprep.subr.bf16.mxu0 0
      %407 = vmatpush2.bf16.msra.mxu0 0
      %408 = vmatprep.subr.bf16.mxu0 0
      %409 = vmatpush2.bf16.msra.mxu0 0
      %410 = vmatprep.subr.bf16.mxu0 0
      %411 = vmatpush2.bf16.msra.mxu0 0
      %412 = vmatprep.subr.bf16.mxu0 0
      %413 = vmatpush2.bf16.msra.mxu0 0
      %414 = vmatprep.subr.bf16.mxu0 0
      %415 = vmatpush2.bf16.msra.mxu0 0
      %416 = vmatprep.subr.bf16.mxu0 0
      %417 = vmatpush2.bf16.msra.mxu0 0
      %418 = vmatprep.mubr.bf16.mxu0 0
      %419 = vmatmul.mubr.bf16.gmra.mxu0 %v314
      %v420 = vpop.f32.mrf.mxu0
      %v421 = vadd.f32 %v336, %v420
      %v422 = vpop.f32.mrf.mxu0
      %v423 = vpop.f32.mrf.mxu0
      %v424 = vadd.f32 %v336, %v423
      %v425 = vpop.f32.mrf.mxu0
      %426 = vdwg.mxu0
      %v427 = vpack.c.bf16 %v424, %v421
      %v429 = vunpack.c.l.b16 %v427
      %v430 = vunpack.c.h.b16 %v427
      %v431 = vpack.c.b16 %v429, %v429
      %v432 = vpack.c.b16 %v430, %v430
      %435 = vst [vmem:[%s226] sm:$0xf] %v431
      %436 = vst [vmem:[%s226 + $0x4] sm:$0xf] %v432
      %s437 = smul.u32 2, %s16
      %p438 = scmp.lt.s32.totalorder %s437, 3
      %s439 = scalar_select %p438, %s437, 3
      %s440 = smul.addr %s439, 4
      %s441 = scalar_lea.vmem %s5, %s440
      // Predicated region
      $region41: #{custom_deeplabv3_forward.2} parent=39 // pred_check
        %p442 = pneg %p144
      $region42: #{custom_deeplabv3_forward.2} parent=39 // pred_check_branch
        %444 = sbr.rel (%p442) target = $region44
      $region43: #{custom_deeplabv3_forward.2} parent=39 // pred_region
        %s445 = smul.u32 2, %s16
      $region44: #{custom_deeplabv3_forward.2} parent=39 // pred_fallthru
        _
    $region40: #{custom_deeplabv3_forward.2} parent=5 // pred_fallthru
      _
    %p446 = scmp.le.s32.totalorder 2, %s11
    // Predicated region
    $region45: #{custom_deeplabv3_forward.2} parent=5 // pred_check
      %p447 = pneg %p446
    $region46: #{custom_deeplabv3_forward.2} parent=5 // pred_check_branch
      %449 = sbr.rel (%p447) target = $region48
    $region47: #{custom_deeplabv3_forward.2} parent=5 // pred_region
      %s450 = ssub.s32 %s11, 2
      // Predicated region
      $region49: #{custom_deeplabv3_forward.2} parent=47 // pred_check
        %p451 = pneg %p150
      $region50: #{custom_deeplabv3_forward.2} parent=47 // pred_check_branch
        %453 = sbr.rel (%p451) target = $region52
      $region51: #{custom_deeplabv3_forward.2} parent=47 // pred_region
        %s454 = smul.u32 2, %s17
        %p455 = scmp.lt.s32.totalorder %s454, 3
        %s456 = scalar_select %p455, %s454, 3
        %s457 = smul.addr %s456, 4
        %s458 = scalar_lea.vmem %s5, %s457
      $region52: #{custom_deeplabv3_forward.2} parent=47 // pred_fallthru
        _
    $region48: #{custom_deeplabv3_forward.2} parent=5 // pred_fallthru
      _
  $region6: #{custom_deeplabv3_forward.2} parent=0 // loop_footer
    %s15 = sadd.s32 1, %s11
  $region7: #{custom_deeplabv3_forward.2} parent=0 // loop_footer_branch
    %10 = sbr.rel target = $region3
  $region8: #{custom_deeplabv3_forward.2} parent=0 // loop_exit
    _

// kernel: custom_deeplabv3_forward.3
$region0: #{custom_deeplabv3_forward.3}
  #allocation0 [shape = 'u32[]', space=smem, size = 0x4, offset = 0x4, fixed_abs, tag = 'smem constant byte address 0x4 - core index']
  #allocation1 [shape = 'u32[144,128]{1,0:T(1,128)}', space=vmem, size = 0x12000, scoped, tag = 'internal scratch']
  #allocation2 [shape = 'bf16[128,8]{1,0:T(8,128)(2,1)}', space=vmem, size = 0x8000, scoped, tag = 'scratch operand']
  %s0 = inlined_call_operand.vmem [shape: bf16[16,8,8], index: 0, kind: input, shape index: {}]
  %s1 = inlined_call_operand.vmem [shape: bf16[16,8], index: 1, kind: input, shape index: {}]
  %s2 = inlined_call_operand.vmem [shape: bf16[8,16], index: 2, kind: input, shape index: {}]
  %s3 = inlined_call_operand.hbm [shape: f32[256,16], index: 3, kind: output, shape index: {}]
  %s4 = sld [smem:[#allocation0]]
  $region45: #{custom_deeplabv3_forward.3} parent=0
    _
  %s6 = ssub.s32 1, %s4
  %s7 = scalar_select 0, %s6, %s4
  $region1: #{custom_deeplabv3_forward.3} parent=0
    #allocation3 [shape = 'u8[131072]{0}', space=vmem, size = 0x20000, scoped, tag = 'output window, operand 0']
    #allocation4 [shape = 's32[2]{0}', space=sflag, size = 0x8, scoped, tag = 'scoped memory for custom_deeplabv3_forward.3']
    %8 = vsyncpa [#allocation4], 0
    %s9 = scalar_lea.sflag [#allocation4], 1
    %10 = vsyncpa %s9, 0
    loop: start=0, step=1, limit=4
    $region2: #{custom_deeplabv3_forward.3} parent=1 // loop_pre_header
      _
    $region3: #{custom_deeplabv3_forward.3} parent=1 // loop_header
      %s12 = sphi 0, %s16
      %p13 = scmp.ge.s32.totalorder %s12, 4
      %s22 = sphi 0, %s24
      %s25 = sphi 0, %s22
      %s26 = sphi 0, %s25
      %s42 = sphi 0, %s26
      %s46 = sphi 0, %s46
      %s48 = sphi 0, %s46
      %s49 = sphi 0, %s48
      %s63 = sphi 0, %s49
      %s67 = sphi 0, %s67
      %s69 = sphi 0, %s67
      %s70 = sphi 0, %s69
      %s84 = sphi 0, %s70
      %s90 = sphi 0, %s92
      %s93 = sphi 0, %s90
      %s94 = sphi 0, %s93
      %s110 = sphi 0, %s94
    $region4: #{custom_deeplabv3_forward.3} parent=1 // loop_header_branch
      %15 = sbr.rel (%p13) target = $region8
    $region5: #{custom_deeplabv3_forward.3} parent=1 // loop_body
      %s17 = ssub.s32 %s12, 1
      %s18 = ssub.s32 %s12, 2
      %s19 = sadd.s32 %s12, 1
      %s20 = ssub.s32 %s12, %s19
      %p21 = scmp.eq.s32.totalorder %s20, 0
      %s23 = sadd.s32 %s22, 1
      %s24 = scalar_select %p21, %s22, %s23
      %p27 = pneg %p21
      %p28 = scmp.eq.s32.totalorder %s12, 1
      %p29 = por %p27, %p28
      %p30 = scmp.ne.s32.totalorder %s22, %s25
      %p31 = scmp.eq.s32.totalorder %s12, 0
      %p32 = por %p30, %p31
      %p33 = scmp.ne.s32.totalorder %s22, %s25
      %p34 = scmp.eq.s32.totalorder %s17, 1
      %p35 = por %p33, %p34
      %p36 = scmp.ne.s32.totalorder %s25, %s26
      %p37 = scmp.eq.s32.totalorder %s17, 0
      %p38 = por %p36, %p37
      %p39 = scmp.ne.s32.totalorder %s25, %s26
      %p40 = scmp.eq.s32.totalorder %s18, 1
      %p41 = por %p39, %p40
      %p43 = scmp.ne.s32.totalorder %s26, %s42
      %p44 = scmp.eq.s32.totalorder %s18, 0
      %p45 = por %p43, %p44
      %s47 = sadd.s32 %s46, 1
      %p50 = scmp.eq.s32.totalorder %s12, 1
      %p51 = scmp.ne.s32.totalorder %s46, %s48
      %p52 = scmp.eq.s32.totalorder %s12, 0
      %p53 = por %p51, %p52
      %p54 = scmp.ne.s32.totalorder %s46, %s48
      %p55 = scmp.eq.s32.totalorder %s17, 1
      %p56 = por %p54, %p55
      %p57 = scmp.ne.s32.totalorder %s48, %s49
      %p58 = scmp.eq.s32.totalorder %s17, 0
      %p59 = por %p57, %p58
      %p60 = scmp.ne.s32.totalorder %s48, %s49
      %p61 = scmp.eq.s32.totalorder %s18, 1
      %p62 = por %p60, %p61
      %p64 = scmp.ne.s32.totalorder %s49, %s63
      %p65 = scmp.eq.s32.totalorder %s18, 0
      %p66 = por %p64, %p65
      %s68 = sadd.s32 %s67, 1
      %p71 = scmp.eq.s32.totalorder %s12, 1
      %p72 = scmp.ne.s32.totalorder %s67, %s69
      %p73 = scmp.eq.s32.totalorder %s12, 0
      %p74 = por %p72, %p73
      %p75 = scmp.ne.s32.totalorder %s67, %s69
      %p76 = scmp.eq.s32.totalorder %s17, 1
      %p77 = por %p75, %p76
      %p78 = scmp.ne.s32.totalorder %s69, %s70
      %p79 = scmp.eq.s32.totalorder %s17, 0
      %p80 = por %p78, %p79
      %p81 = scmp.ne.s32.totalorder %s69, %s70
      %p82 = scmp.eq.s32.totalorder %s18, 1
      %p83 = por %p81, %p82
      %p85 = scmp.ne.s32.totalorder %s70, %s84
      %p86 = scmp.eq.s32.totalorder %s18, 0
      %p87 = por %p85, %p86
      %s88 = ssub.s32 %s12, %s19
      %p89 = scmp.eq.s32.totalorder %s88, 0
      %s91 = sadd.s32 %s90, 1
      %s92 = scalar_select %p89, %s90, %s91
      %p95 = pneg %p89
      %p96 = scmp.eq.s32.totalorder %s12, 1
      %p97 = por %p95, %p96
      %p98 = scmp.ne.s32.totalorder %s90, %s93
      %p99 = scmp.eq.s32.totalorder %s12, 0
      %p100 = por %p98, %p99
      %p101 = scmp.ne.s32.totalorder %s90, %s93
      %p102 = scmp.eq.s32.totalorder %s17, 1
      %p103 = por %p101, %p102
      %p104 = scmp.ne.s32.totalorder %s93, %s94
      %p105 = scmp.eq.s32.totalorder %s17, 0
      %p106 = por %p104, %p105
      %p107 = scmp.ne.s32.totalorder %s93, %s94
      %p108 = scmp.eq.s32.totalorder %s18, 1
      %p109 = por %p107, %p108
      %p111 = scmp.ne.s32.totalorder %s94, %s110
      %p112 = scmp.eq.s32.totalorder %s18, 0
      %p113 = por %p111, %p112
      %p114 = scmp.le.s32.totalorder 1, %s12
      %p115 = scmp.lt.s32.totalorder %s12, 3
      %p116 = pnand %p114, %p115
      %p117 = pneg %p116
      // Predicated region
      $region9: #{custom_deeplabv3_forward.3} parent=5 // pred_check
        _
      $region10: #{custom_deeplabv3_forward.3} parent=5 // pred_check_branch
        %119 = sbr.rel (%p116) target = $region12
      $region11: #{custom_deeplabv3_forward.3} parent=5 // pred_region
        %s120 = ssub.s32 %s12, 1
        // Predicated region
        $region13: #{custom_deeplabv3_forward.3} parent=11 // pred_check
          %p121 = pneg %p59
        $region14: #{custom_deeplabv3_forward.3} parent=11 // pred_check_branch
          %123 = sbr.rel (%p121) target = $region16
        $region15: #{custom_deeplabv3_forward.3} parent=11 // pred_region
          _
        $region16: #{custom_deeplabv3_forward.3} parent=11 // pred_fallthru
          _
        // Predicated region
        $region17: #{custom_deeplabv3_forward.3} parent=11 // pred_check
          %p124 = pneg %p80
        $region18: #{custom_deeplabv3_forward.3} parent=11 // pred_check_branch
          %126 = sbr.rel (%p124) target = $region20
        $region19: #{custom_deeplabv3_forward.3} parent=11 // pred_region
          _
        $region20: #{custom_deeplabv3_forward.3} parent=11 // pred_fallthru
          _
      $region12: #{custom_deeplabv3_forward.3} parent=5 // pred_fallthru
        _
      %p127 = scmp.lt.s32.totalorder %s12, 2
      // Predicated region
      $region21: #{custom_deeplabv3_forward.3} parent=5 // pred_check
        %p128 = pneg %p127
      $region22: #{custom_deeplabv3_forward.3} parent=5 // pred_check_branch
        %130 = sbr.rel (%p128) target = $region24
      $region23: #{custom_deeplabv3_forward.3} parent=5 // pred_region
        // Predicated region
        $region25: #{custom_deeplabv3_forward.3} parent=23 // pred_check
          %p131 = pneg %p32
        $region26: #{custom_deeplabv3_forward.3} parent=23 // pred_check_branch
          %133 = sbr.rel (%p131) target = $region28
        $region27: #{custom_deeplabv3_forward.3} parent=23 // pred_region
          %s134 = smul.u32 8, %s12
          %p135 = scmp.lt.s32.totalorder %s134, 15
          %s136 = scalar_select %p135, %s134, 15
          %s137 = smul.addr %s136, 4
          %s138 = scalar_lea.vmem %s0, %s137
          %s139 = smul.u32 8, %s12
        $region28: #{custom_deeplabv3_forward.3} parent=23 // pred_fallthru
          _
      $region24: #{custom_deeplabv3_forward.3} parent=5 // pred_fallthru
        _
      %p140 = scmp.le.s32.totalorder 1, %s12
      %p141 = scmp.lt.s32.totalorder %s12, 3
      %p142 = pnand %p140, %p141
      %p143 = pneg %p142
      // Predicated region
      $region29: #{custom_deeplabv3_forward.3} parent=5 // pred_check
        _
      $region30: #{custom_deeplabv3_forward.3} parent=5 // pred_check_branch
        %145 = sbr.rel (%p142) target = $region32
      $region31: #{custom_deeplabv3_forward.3} parent=5 // pred_region
        %s146 = ssub.s32 %s12, 1
        %s147 = smul.u32 8, %s17
        %p148 = scmp.lt.s32.totalorder %s147, 15
        %s149 = scalar_select %p148, %s147, 15
        %s150 = smul.addr %s149, 4
        %s151 = scalar_lea.vmem %s0, %s150
        %p152 = pneg %p38
        %p153 = pneg %p35
        %p154 = pneg %p59
        %p155 = pneg %p56
        %p156 = pneg %p80
        %p157 = pneg %p77
        %p158 = pneg %p106
        %p159 = pneg %p103
        %s160 = sand.u32 %s93, 1
        %s161 = scalar_lea.sflag [#allocation4], %s160
        %s162 = sand.u32 %s93, 1
        %s163 = smul.addr %s162, 128
        %s164 = scalar_lea.vmem [#allocation3], %s163
        %s165 = smul.u32 8, %s17
        %p166 = scmp.lt.s32.totalorder %s165, 15
        %s167 = scalar_select %p166, %s165, 15
        %s168 = smul.addr %s167, 4
        %s169 = scalar_lea.vmem %s0, %s168
        %s170 = smul.u32 8, %s17
        %s171 = smul.u32 16, %s17
        %v173 = vld [vmem:[%s1] sm:$0xf]
        %v174 = vld [vmem:[%s1 + $0x4] sm:$0xf]
        %v175 = vld [vmem:[%s169] sm:$0xf]
        %v178 = vunpack.c.l.b16 %v173
        %v179 = vunpack.c.l.b16 %v174
        %v180 = vpack.c.b16 %v179, %v178
        %vm181 = vcmask 64512
        %v183 = vsel %vm181, %v180, 0
        %vm185 = vcmask 1043456
        %v187 = vsel %vm185, %v175, 0
        %189 = vmatprep.subr.bf16.mxu0 0
        %190 = vmatpush1.bf16.msra.mxu0 0
        %191 = vmatprep.subr.bf16.mxu0 0
        %192 = vmatpush1.bf16.msra.mxu0 0
        %193 = vmatprep.subr.bf16.mxu0 0
        %194 = vmatpush1.bf16.msra.mxu0 0
        %195 = vmatprep.subr.bf16.mxu0 0
        %196 = vmatpush1.bf16.msra.mxu0 0
        %197 = vmatprep.subr.bf16.mxu0 0
        %198 = vmatpush1.bf16.msra.mxu0 0
        %199 = vmatprep.subr.bf16.mxu0 0
        %200 = vmatpush1.bf16.msra.mxu0 0
        %201 = vmatprep.subr.bf16.mxu0 0
        %202 = vmatpush1.bf16.msra.mxu0 0
        %203 = vmatprep.subr.bf16.mxu0 0
        %204 = vmatpush1.bf16.msra.mxu0 %v187
        %205 = vmatprep.subr.bf16.mxu0 0
        %206 = vmatpush2.bf16.msra.mxu0 0
        %207 = vmatprep.subr.bf16.mxu0 0
        %208 = vmatpush2.bf16.msra.mxu0 0
        %209 = vmatprep.subr.bf16.mxu0 0
        %210 = vmatpush2.bf16.msra.mxu0 0
        %211 = vmatprep.subr.bf16.mxu0 0
        %212 = vmatpush2.bf16.msra.mxu0 0
        %213 = vmatprep.subr.bf16.mxu0 0
        %214 = vmatpush2.bf16.msra.mxu0 0
        %215 = vmatprep.subr.bf16.mxu0 0
        %216 = vmatpush2.bf16.msra.mxu0 0
        %217 = vmatprep.subr.bf16.mxu0 0
        %218 = vmatpush2.bf16.msra.mxu0 0
        %219 = vmatprep.subr.bf16.mxu0 0
        %220 = vmatpush2.bf16.msra.mxu0 0
        %221 = vmatprep.mubr.bf16.mxu0 0
        %222 = vmatmul.mubr.bf16.gmra.mxu0 %v183
        %v223 = vpop.f32.mrf.mxu0
        %v224 = vadd.f32 0.0, %v223
        %v225 = vpop.f32.mrf.mxu0
        %v226 = vpop.f32.mrf.mxu0
        %v227 = vadd.f32 0.0, %v226
        %v228 = vpop.f32.mrf.mxu0
        %229 = vdwg.mxu0
        %v230 = vpack.c.bf16 %v227, %v224
        %v232 = vunpack.c.l.b16 %v230
        %v233 = vunpack.c.h.b16 %v230
        %v234 = vpack.c.b16 %v232, %v232
        %v235 = vpack.c.b16 %v233, %v233
        %vm238 = vcmask 60416
        %239 = vst.msk [vmem:[#allocation2] sm:$0xf] %vm238, %v234
        %240 = vst.msk [vmem:[#allocation2 + $0x4] sm:$0xf] %vm238, %v235
        %s241 = scalar_lea.vmem %s169, 4
        %v242 = vld [vmem:[%s241] sm:$0xf]
        %v244 = vsel %vm185, %v242, 0
        %246 = vmatprep.subr.bf16.mxu0 0
        %247 = vmatpush1.bf16.msra.mxu0 0
        %248 = vmatprep.subr.bf16.mxu0 0
        %249 = vmatpush1.bf16.msra.mxu0 0
        %250 = vmatprep.subr.bf16.mxu0 0
        %251 = vmatpush1.bf16.msra.mxu0 0
        %252 = vmatprep.subr.bf16.mxu0 0
        %253 = vmatpush1.bf16.msra.mxu0 0
        %254 = vmatprep.subr.bf16.mxu0 0
        %255 = vmatpush1.bf16.msra.mxu0 0
        %256 = vmatprep.subr.bf16.mxu0 0
        %257 = vmatpush1.bf16.msra.mxu0 0
        %258 = vmatprep.subr.bf16.mxu0 0
        %259 = vmatpush1.bf16.msra.mxu0 0
        %260 = vmatprep.subr.bf16.mxu0 0
        %261 = vmatpush1.bf16.msra.mxu0 %v244
        %262 = vmatprep.subr.bf16.mxu0 0
        %263 = vmatpush2.bf16.msra.mxu0 0
        %264 = vmatprep.subr.bf16.mxu0 0
        %265 = vmatpush2.bf16.msra.mxu0 0
        %266 = vmatprep.subr.bf16.mxu0 0
        %267 = vmatpush2.bf16.msra.mxu0 0
        %268 = vmatprep.subr.bf16.mxu0 0
        %269 = vmatpush2.bf16.msra.mxu0 0
        %270 = vmatprep.subr.bf16.mxu0 0
        %271 = vmatpush2.bf16.msra.mxu0 0
        %272 = vmatprep.subr.bf16.mxu0 0
        %273 = vmatpush2.bf16.msra.mxu0 0
        %274 = vmatprep.subr.bf16.mxu0 0
        %275 = vmatpush2.bf16.msra.mxu0 0
        %276 = vmatprep.subr.bf16.mxu0 0
        %277 = vmatpush2.bf16.msra.mxu0 0
        %278 = vmatprep.mubr.bf16.mxu0 0
        %279 = vmatmul.mubr.bf16.gmra.mxu0 %v183
        %v280 = vpop.f32.mrf.mxu0
        %v281 = vadd.f32 0.0, %v280
        %v282 = vpop.f32.mrf.mxu0
        %v283 = vpop.f32.mrf.mxu0
        %v284 = vadd.f32 0.0, %v283
        %v285 = vpop.f32.mrf.mxu0
        %286 = vdwg.mxu0
        %v287 = vpack.c.bf16 %v284, %v281
        %v289 = vunpack.c.l.b16 %v287
        %v290 = vunpack.c.h.b16 %v287
        %v291 = vpack.c.b16 %v289, %v289
        %v292 = vpack.c.b16 %v290, %v290
        %s295 = scalar_lea.vmem [#allocation2], 8
        %296 = vst.msk [vmem:[%s295] sm:$0xf] %vm238, %v291
        %297 = vst.msk [vmem:[%s295 + $0x4] sm:$0xf] %vm238, %v292
        %s298 = scalar_lea.vmem %s169, 8
        %v299 = vld [vmem:[%s298] sm:$0xf]
        %v301 = vsel %vm185, %v299, 0
        %303 = vmatprep.subr.bf16.mxu0 0
        %304 = vmatpush1.bf16.msra.mxu0 0
        %305 = vmatprep.subr.bf16.mxu0 0
        %306 = vmatpush1.bf16.msra.mxu0 0
        %307 = vmatprep.subr.bf16.mxu0 0
        %308 = vmatpush1.bf16.msra.mxu0 0
        %309 = vmatprep.subr.bf16.mxu0 0
        %310 = vmatpush1.bf16.msra.mxu0 0
        %311 = vmatprep.subr.bf16.mxu0 0
        %312 = vmatpush1.bf16.msra.mxu0 0
        %313 = vmatprep.subr.bf16.mxu0 0
        %314 = vmatpush1.bf16.msra.mxu0 0
        %315 = vmatprep.subr.bf16.mxu0 0
        %316 = vmatpush1.bf16.msra.mxu0 0
        %317 = vmatprep.subr.bf16.mxu0 0
        %318 = vmatpush1.bf16.msra.mxu0 %v301
        %319 = vmatprep.subr.bf16.mxu0 0
        %320 = vmatpush2.bf16.msra.mxu0 0
        %321 = vmatprep.subr.bf16.mxu0 0
        %322 = vmatpush2.bf16.msra.mxu0 0
        %323 = vmatprep.subr.bf16.mxu0 0
        %324 = vmatpush2.bf16.msra.mxu0 0
        %325 = vmatprep.subr.bf16.mxu0 0
        %326 = vmatpush2.bf16.msra.mxu0 0
        %327 = vmatprep.subr.bf16.mxu0 0
        %328 = vmatpush2.bf16.msra.mxu0 0
        %329 = vmatprep.subr.bf16.mxu0 0
        %330 = vmatpush2.bf16.msra.mxu0 0
        %331 = vmatprep.subr.bf16.mxu0 0
        %332 = vmatpush2.bf16.msra.mxu0 0
        %333 = vmatprep.subr.bf16.mxu0 0
        %334 = vmatpush2.bf16.msra.mxu0 0
        %335 = vmatprep.mubr.bf16.mxu0 0
        %336 = vmatmul.mubr.bf16.gmra.mxu0 %v183
        %v337 = vpop.f32.mrf.mxu0
        %v338 = vadd.f32 0.0, %v337
        %v339 = vpop.f32.mrf.mxu0
        %v340 = vpop.f32.mrf.mxu0
        %v341 = vadd.f32 0.0, %v340
        %v342 = vpop.f32.mrf.mxu0
        %343 = vdwg.mxu0
        %v344 = vpack.c.bf16 %v341, %v338
        %v346 = vunpack.c.l.b16 %v344
        %v347 = vunpack.c.h.b16 %v344
        %v348 = vpack.c.b16 %v346, %v346
        %v349 = vpack.c.b16 %v347, %v347
        %s352 = scalar_lea.vmem [#allocation2], 16
        %353 = vst.msk [vmem:[%s352] sm:$0xf] %vm238, %v348
        %354 = vst.msk [vmem:[%s352 + $0x4] sm:$0xf] %vm238, %v349
        %s355 = scalar_lea.vmem %s169, 12
        %v356 = vld [vmem:[%s355] sm:$0xf]
        %v358 = vsel %vm185, %v356, 0
        %360 = vmatprep.subr.bf16.mxu0 0
        %361 = vmatpush1.bf16.msra.mxu0 0
        %362 = vmatprep.subr.bf16.mxu0 0
        %363 = vmatpush1.bf16.msra.mxu0 0
        %364 = vmatprep.subr.bf16.mxu0 0
        %365 = vmatpush1.bf16.msra.mxu0 0
        %366 = vmatprep.subr.bf16.mxu0 0
        %367 = vmatpush1.bf16.msra.mxu0 0
        %368 = vmatprep.subr.bf16.mxu0 0
        %369 = vmatpush1.bf16.msra.mxu0 0
        %370 = vmatprep.subr.bf16.mxu0 0
        %371 = vmatpush1.bf16.msra.mxu0 0
        %372 = vmatprep.subr.bf16.mxu0 0
        %373 = vmatpush1.bf16.msra.mxu0 0
        %374 = vmatprep.subr.bf16.mxu0 0
        %375 = vmatpush1.bf16.msra.mxu0 %v358
        %376 = vmatprep.subr.bf16.mxu0 0
        %377 = vmatpush2.bf16.msra.mxu0 0
        %378 = vmatprep.subr.bf16.mxu0 0
        %379 = vmatpush2.bf16.msra.mxu0 0
        %380 = vmatprep.subr.bf16.mxu0 0
        %381 = vmatpush2.bf16.msra.mxu0 0
        %382 = vmatprep.subr.bf16.mxu0 0
        %383 = vmatpush2.bf16.msra.mxu0 0
        %384 = vmatprep.subr.bf16.mxu0 0
        %385 = vmatpush2.bf16.msra.mxu0 0
        %386 = vmatprep.subr.bf16.mxu0 0
        %387 = vmatpush2.bf16.msra.mxu0 0
        %388 = vmatprep.subr.bf16.mxu0 0
        %389 = vmatpush2.bf16.msra.mxu0 0
        %390 = vmatprep.subr.bf16.mxu0 0
        %391 = vmatpush2.bf16.msra.mxu0 0
        %392 = vmatprep.mubr.bf16.mxu0 0
        %393 = vmatmul.mubr.bf16.gmra.mxu0 %v183
        %v394 = vpop.f32.mrf.mxu0
        %v395 = vadd.f32 0.0, %v394
        %v396 = vpop.f32.mrf.mxu0
        %v397 = vpop.f32.mrf.mxu0
        %v398 = vadd.f32 0.0, %v397
        %v399 = vpop.f32.mrf.mxu0
        %400 = vdwg.mxu0
        %v401 = vpack.c.bf16 %v398, %v395
        %v403 = vunpack.c.l.b16 %v401
        %v404 = vunpack.c.h.b16 %v401
        %v405 = vpack.c.b16 %v403, %v403
        %v406 = vpack.c.b16 %v404, %v404
        %s409 = scalar_lea.vmem [#allocation2], 24
        %410 = vst.msk [vmem:[%s409] sm:$0xf] %vm238, %v405
        %411 = vst.msk [vmem:[%s409 + $0x4] sm:$0xf] %vm238, %v406
        %s412 = scalar_lea.vmem %s169, 16
        %v413 = vld [vmem:[%s412] sm:$0xf]
        %v415 = vsel %vm185, %v413, 0
        %417 = vmatprep.subr.bf16.mxu0 0
        %418 = vmatpush1.bf16.msra.mxu0 0
        %419 = vmatprep.subr.bf16.mxu0 0
        %420 = vmatpush1.bf16.msra.mxu0 0
        %421 = vmatprep.subr.bf16.mxu0 0
        %422 = vmatpush1.bf16.msra.mxu0 0
        %423 = vmatprep.subr.bf16.mxu0 0
        %424 = vmatpush1.bf16.msra.mxu0 0
        %425 = vmatprep.subr.bf16.mxu0 0
        %426 = vmatpush1.bf16.msra.mxu0 0
        %427 = vmatprep.subr.bf16.mxu0 0
        %428 = vmatpush1.bf16.msra.mxu0 0
        %429 = vmatprep.subr.bf16.mxu0 0
        %430 = vmatpush1.bf16.msra.mxu0 0
        %431 = vmatprep.subr.bf16.mxu0 0
        %432 = vmatpush1.bf16.msra.mxu0 %v415
        %433 = vmatprep.subr.bf16.mxu0 0
        %434 = vmatpush2.bf16.msra.mxu0 0
        %435 = vmatprep.subr.bf16.mxu0 0
        %436 = vmatpush2.bf16.msra.mxu0 0
        %437 = vmatprep.subr.bf16.mxu0 0
        %438 = vmatpush2.bf16.msra.mxu0 0
        %439 = vmatprep.subr.bf16.mxu0 0
        %440 = vmatpush2.bf16.msra.mxu0 0
        %441 = vmatprep.subr.bf16.mxu0 0
        %442 = vmatpush2.bf16.msra.mxu0 0
        %443 = vmatprep.subr.bf16.mxu0 0
        %444 = vmatpush2.bf16.msra.mxu0 0
        %445 = vmatprep.subr.bf16.mxu0 0
        %446 = vmatpush2.bf16.msra.mxu0 0
        %447 = vmatprep.subr.bf16.mxu0 0
        %448 = vmatpush2.bf16.msra.mxu0 0
        %449 = vmatprep.mubr.bf16.mxu0 0
        %450 = vmatmul.mubr.bf16.gmra.mxu0 %v183
        %v451 = vpop.f32.mrf.mxu0
        %v452 = vadd.f32 0.0, %v451
        %v453 = vpop.f32.mrf.mxu0
        %v454 = vpop.f32.mrf.mxu0
        %v455 = vadd.f32 0.0, %v454
        %v456 = vpop.f32.mrf.mxu0
        %457 = vdwg.mxu0
        %v458 = vpack.c.bf16 %v455, %v452
        %v460 = vunpack.c.l.b16 %v458
        %v461 = vunpack.c.h.b16 %v458
        %v462 = vpack.c.b16 %v460, %v460
        %v463 = vpack.c.b16 %v461, %v461
        %s466 = scalar_lea.vmem [#allocation2], 32
        %467 = vst.msk [vmem:[%s466] sm:$0xf] %vm238, %v462
        %468 = vst.msk [vmem:[%s466 + $0x4] sm:$0xf] %vm238, %v463
        %s469 = scalar_lea.vmem %s169, 20
        %v470 = vld [vmem:[%s469] sm:$0xf]
        %v472 = vsel %vm185, %v470, 0
        %474 = vmatprep.subr.bf16.mxu0 0
        %475 = vmatpush1.bf16.msra.mxu0 0
        %476 = vmatprep.subr.bf16.mxu0 0
        %477 = vmatpush1.bf16.msra.mxu0 0
        %478 = vmatprep.subr.bf16.mxu0 0
        %479 = vmatpush1.bf16.msra.mxu0 0
        %480 = vmatprep.subr.bf16.mxu0 0
        %481 = vmatpush1.bf16.msra.mxu0 0
        %482 = vmatprep.subr.bf16.mxu0 0
        %483 = vmatpush1.bf16.msra.mxu0 0
        %484 = vmatprep.subr.bf16.mxu0 0
        %485 = vmatpush1.bf16.msra.mxu0 0
        %486 = vmatprep.subr.bf16.mxu0 0
        %487 = vmatpush1.bf16.msra.mxu0 0
        %488 = vmatprep.subr.bf16.mxu0 0
        %489 = vmatpush1.bf16.msra.mxu0 %v472
        %490 = vmatprep.subr.bf16.mxu0 0
        %491 = vmatpush2.bf16.msra.mxu0 0
        %492 = vmatprep.subr.bf16.mxu0 0
        %493 = vmatpush2.bf16.msra.mxu0 0
        %494 = vmatprep.subr.bf16.mxu0 0
        %495 = vmatpush2.bf16.msra.mxu0 0
        %496 = vmatprep.subr.bf16.mxu0 0
        %497 = vmatpush2.bf16.msra.mxu0 0
        %498 = vmatprep.subr.bf16.mxu0 0
        %499 = vmatpush2.bf16.msra.mxu0 0
        %500 = vmatprep.subr.bf16.mxu0 0
        %501 = vmatpush2.bf16.msra.mxu0 0
        %502 = vmatprep.subr.bf16.mxu0 0
        %503 = vmatpush2.bf16.msra.mxu0 0
        %504 = vmatprep.subr.bf16.mxu0 0
        %505 = vmatpush2.bf16.msra.mxu0 0
        %506 = vmatprep.mubr.bf16.mxu0 0
        %507 = vmatmul.mubr.bf16.gmra.mxu0 %v183
        %v508 = vpop.f32.mrf.mxu0
        %v509 = vadd.f32 0.0, %v508
        %v510 = vpop.f32.mrf.mxu0
        %v511 = vpop.f32.mrf.mxu0
        %v512 = vadd.f32 0.0, %v511
        %v513 = vpop.f32.mrf.mxu0
        %514 = vdwg.mxu0
        %v515 = vpack.c.bf16 %v512, %v509
        %v517 = vunpack.c.l.b16 %v515
        %v518 = vunpack.c.h.b16 %v515
        %v519 = vpack.c.b16 %v517, %v517
        %v520 = vpack.c.b16 %v518, %v518
        %s523 = scalar_lea.vmem [#allocation2], 40
        %524 = vst.msk [vmem:[%s523] sm:$0xf] %vm238, %v519
        %525 = vst.msk [vmem:[%s523 + $0x4] sm:$0xf] %vm238, %v520
        %s526 = scalar_lea.vmem %s169, 24
        %v527 = vld [vmem:[%s526] sm:$0xf]
        %v529 = vsel %vm185, %v527, 0
        %531 = vmatprep.subr.bf16.mxu0 0
        %532 = vmatpush1.bf16.msra.mxu0 0
        %533 = vmatprep.subr.bf16.mxu0 0
        %534 = vmatpush1.bf16.msra.mxu0 0
        %535 = vmatprep.subr.bf16.mxu0 0
        %536 = vmatpush1.bf16.msra.mxu0 0
        %537 = vmatprep.subr.bf16.mxu0 0
        %538 = vmatpush1.bf16.msra.mxu0 0
        %539 = vmatprep.subr.bf16.mxu0 0
        %540 = vmatpush1.bf16.msra.mxu0 0
        %541 = vmatprep.subr.bf16.mxu0 0
        %542 = vmatpush1.bf16.msra.mxu0 0
        %543 = vmatprep.subr.bf16.mxu0 0
        %544 = vmatpush1.bf16.msra.mxu0 0
        %545 = vmatprep.subr.bf16.mxu0 0
        %546 = vmatpush1.bf16.msra.mxu0 %v529
        %547 = vmatprep.subr.bf16.mxu0 0
        %548 = vmatpush2.bf16.msra.mxu0 0
        %549 = vmatprep.subr.bf16.mxu0 0
        %550 = vmatpush2.bf16.msra.mxu0 0
        %551 = vmatprep.subr.bf16.mxu0 0
        %552 = vmatpush2.bf16.msra.mxu0 0
        %553 = vmatprep.subr.bf16.mxu0 0
        %554 = vmatpush2.bf16.msra.mxu0 0
        %555 = vmatprep.subr.bf16.mxu0 0
        %556 = vmatpush2.bf16.msra.mxu0 0
        %557 = vmatprep.subr.bf16.mxu0 0
        %558 = vmatpush2.bf16.msra.mxu0 0
        %559 = vmatprep.subr.bf16.mxu0 0
        %560 = vmatpush2.bf16.msra.mxu0 0
        %561 = vmatprep.subr.bf16.mxu0 0
        %562 = vmatpush2.bf16.msra.mxu0 0
        %563 = vmatprep.mubr.bf16.mxu0 0
        %564 = vmatmul.mubr.bf16.gmra.mxu0 %v183
        %v565 = vpop.f32.mrf.mxu0
        %v566 = vadd.f32 0.0, %v565
        %v567 = vpop.f32.mrf.mxu0
        %v568 = vpop.f32.mrf.mxu0
        %v569 = vadd.f32 0.0, %v568
        %v570 = vpop.f32.mrf.mxu0
        %571 = vdwg.mxu0
        %v572 = vpack.c.bf16 %v569, %v566
        %v574 = vunpack.c.l.b16 %v572
        %v575 = vunpack.c.h.b16 %v572
        %v576 = vpack.c.b16 %v574, %v574
        %v577 = vpack.c.b16 %v575, %v575
        %s580 = scalar_lea.vmem [#allocation2], 48
        %581 = vst.msk [vmem:[%s580] sm:$0xf] %vm238, %v576
        %582 = vst.msk [vmem:[%s580 + $0x4] sm:$0xf] %vm238, %v577
        %s583 = scalar_lea.vmem %s169, 28
        %v584 = vld [vmem:[%s583] sm:$0xf]
        %v586 = vsel %vm185, %v584, 0
        %588 = vmatprep.subr.bf16.mxu0 0
        %589 = vmatpush1.bf16.msra.mxu0 0
        %590 = vmatprep.subr.bf16.mxu0 0
        %591 = vmatpush1.bf16.msra.mxu0 0
        %592 = vmatprep.subr.bf16.mxu0 0
        %593 = vmatpush1.bf16.msra.mxu0 0
        %594 = vmatprep.subr.bf16.mxu0 0
        %595 = vmatpush1.bf16.msra.mxu0 0
        %596 = vmatprep.subr.bf16.mxu0 0
        %597 = vmatpush1.bf16.msra.mxu0 0
        %598 = vmatprep.subr.bf16.mxu0 0
        %599 = vmatpush1.bf16.msra.mxu0 0
        %600 = vmatprep.subr.bf16.mxu0 0
        %601 = vmatpush1.bf16.msra.mxu0 0
        %602 = vmatprep.subr.bf16.mxu0 0
        %603 = vmatpush1.bf16.msra.mxu0 %v586
        %604 = vmatprep.subr.bf16.mxu0 0
        %605 = vmatpush2.bf16.msra.mxu0 0
        %606 = vmatprep.subr.bf16.mxu0 0
        %607 = vmatpush2.bf16.msra.mxu0 0
        %608 = vmatprep.subr.bf16.mxu0 0
        %609 = vmatpush2.bf16.msra.mxu0 0
        %610 = vmatprep.subr.bf16.mxu0 0
        %611 = vmatpush2.bf16.msra.mxu0 0
        %612 = vmatprep.subr.bf16.mxu0 0
        %613 = vmatpush2.bf16.msra.mxu0 0
        %614 = vmatprep.subr.bf16.mxu0 0
        %615 = vmatpush2.bf16.msra.mxu0 0
        %616 = vmatprep.subr.bf16.mxu0 0
        %617 = vmatpush2.bf16.msra.mxu0 0
        %618 = vmatprep.subr.bf16.mxu0 0
        %619 = vmatpush2.bf16.msra.mxu0 0
        %620 = vmatprep.mubr.bf16.mxu0 0
        %621 = vmatmul.mubr.bf16.gmra.mxu0 %v183
        %v622 = vpop.f32.mrf.mxu0
        %v623 = vadd.f32 0.0, %v622
        %v624 = vpop.f32.mrf.mxu0
        %v625 = vpop.f32.mrf.mxu0
        %v626 = vadd.f32 0.0, %v625
        %v627 = vpop.f32.mrf.mxu0
        %628 = vdwg.mxu0
        %v629 = vpack.c.bf16 %v626, %v623
        %v631 = vunpack.c.l.b16 %v629
        %v632 = vunpack.c.h.b16 %v629
        %v633 = vpack.c.b16 %v631, %v631
        %v634 = vpack.c.b16 %v632, %v632
        %s637 = scalar_lea.vmem [#allocation2], 56
        %638 = vst.msk [vmem:[%s637] sm:$0xf] %vm238, %v633
        %639 = vst.msk [vmem:[%s637 + $0x4] sm:$0xf] %vm238, %v634
        %v640 = vld [vmem:[#allocation2] sm:$0xf]
        %v641 = vld [vmem:[#allocation2 + $0x4] sm:$0xf]
        %v642 = vld [vmem:[#allocation2 + $0x8] sm:$0xf]
        %v643 = vld [vmem:[#allocation2 + $0xc] sm:$0xf]
        %v644 = vld [vmem:[#allocation2 + $0x10] sm:$0xf]
        %v645 = vld [vmem:[#allocation2 + $0x14] sm:$0xf]
        %v646 = vld [vmem:[#allocation2 + $0x18] sm:$0xf]
        %v647 = vld [vmem:[#allocation2 + $0x1c] sm:$0xf]
        %v648 = vld [vmem:[#allocation2 + $0x20] sm:$0xf]
        %v649 = vld [vmem:[#allocation2 + $0x24] sm:$0xf]
        %v650 = vld [vmem:[#allocation2 + $0x28] sm:$0xf]
        %v651 = vld [vmem:[#allocation2 + $0x2c] sm:$0xf]
        %v652 = vld [vmem:[#allocation2 + $0x30] sm:$0xf]
        %v653 = vld [vmem:[#allocation2 + $0x34] sm:$0xf]
        %v654 = vld [vmem:[#allocation2 + $0x38] sm:$0xf]
        %v655 = vld [vmem:[#allocation2 + $0x3c] sm:$0xf]
        %v656 = vld [vmem:[%s2] sm:$0xf]
        %v673 = vunpack.c.l.b16 %v640
        %v674 = vunpack.c.l.b16 %v641
        %v675 = vunpack.c.l.b16 %v642
        %v676 = vunpack.c.l.b16 %v643
        %v677 = vunpack.c.l.b16 %v644
        %v678 = vunpack.c.l.b16 %v645
        %v679 = vunpack.c.l.b16 %v646
        %v680 = vunpack.c.l.b16 %v647
        %v681 = vunpack.c.l.b16 %v648
        %v682 = vunpack.c.l.b16 %v649
        %v683 = vunpack.c.l.b16 %v650
        %v684 = vunpack.c.l.b16 %v651
        %v685 = vunpack.c.l.b16 %v652
        %v686 = vunpack.c.l.b16 %v653
        %v687 = vunpack.c.l.b16 %v654
        %v688 = vunpack.c.l.b16 %v655
        %v689 = vpack.c.b16 %v674, %v673
        %v690 = vpack.c.b16 %v676, %v675
        %v691 = vpack.c.b16 %v678, %v677
        %v692 = vpack.c.b16 %v680, %v679
        %v693 = vpack.c.b16 %v682, %v681
        %v694 = vpack.c.b16 %v684, %v683
        %v695 = vpack.c.b16 %v686, %v685
        %v696 = vpack.c.b16 %v688, %v687
        %v698 = vsel %vm181, %v689, 0
        %v701 = vsel %vm181, %v690, 0
        %v704 = vsel %vm181, %v691, 0
        %v707 = vsel %vm181, %v692, 0
        %v710 = vsel %vm181, %v693, 0
        %v713 = vsel %vm181, %v694, 0
        %v716 = vsel %vm181, %v695, 0
        %v719 = vsel %vm181, %v696, 0
        %v722 = vsel %vm185, %v656, 0
        %724 = vmatprep.subr.bf16.mxu0 0
        %725 = vmatpush1.bf16.msra.mxu0 0
        %726 = vmatprep.subr.bf16.mxu0 0
        %727 = vmatpush1.bf16.msra.mxu0 0
        %728 = vmatprep.subr.bf16.mxu0 0
        %729 = vmatpush1.bf16.msra.mxu0 0
        %730 = vmatprep.subr.bf16.mxu0 0
        %731 = vmatpush1.bf16.msra.mxu0 0
        %732 = vmatprep.subr.bf16.mxu0 0
        %733 = vmatpush1.bf16.msra.mxu0 0
        %734 = vmatprep.subr.bf16.mxu0 0
        %735 = vmatpush1.bf16.msra.mxu0 0
        %736 = vmatprep.subr.bf16.mxu0 0
        %737 = vmatpush1.bf16.msra.mxu0 0
        %738 = vmatprep.subr.bf16.mxu0 0
        %739 = vmatpush1.bf16.msra.mxu0 %v722
        %740 = vmatprep.subr.bf16.mxu0 0
        %741 = vmatpush2.bf16.msra.mxu0 0
        %742 = vmatprep.subr.bf16.mxu0 0
        %743 = vmatpush2.bf16.msra.mxu0 0
        %744 = vmatprep.subr.bf16.mxu0 0
        %745 = vmatpush2.bf16.msra.mxu0 0
        %746 = vmatprep.subr.bf16.mxu0 0
        %747 = vmatpush2.bf16.msra.mxu0 0
        %748 = vmatprep.subr.bf16.mxu0 0
        %749 = vmatpush2.bf16.msra.mxu0 0
        %750 = vmatprep.subr.bf16.mxu0 0
        %751 = vmatpush2.bf16.msra.mxu0 0
        %752 = vmatprep.subr.bf16.mxu0 0
        %753 = vmatpush2.bf16.msra.mxu0 0
        %754 = vmatprep.subr.bf16.mxu0 0
        %755 = vmatpush2.bf16.msra.mxu0 0
        %756 = vmatprep.mubr.bf16.mxu0 0
        %757 = vmatmul.mubr.bf16.gmra.mxu0 %v698
        %v758 = vpop.f32.mrf.mxu0
        %v759 = vadd.f32 0.0, %v758
        %v760 = vpop.f32.mrf.mxu0
        %v761 = vpop.f32.mrf.mxu0
        %v762 = vadd.f32 0.0, %v761
        %v763 = vpop.f32.mrf.mxu0
        %764 = vmatprep.mubr.bf16.mxu0 0
        %765 = vmatmul.mubr.bf16.gmra.mxu0 %v701
        %v766 = vpop.f32.mrf.mxu0
        %v767 = vadd.f32 0.0, %v766
        %v768 = vpop.f32.mrf.mxu0
        %v769 = vpop.f32.mrf.mxu0
        %v770 = vadd.f32 0.0, %v769
        %v771 = vpop.f32.mrf.mxu0
        %772 = vmatprep.mubr.bf16.mxu0 0
        %773 = vmatmul.mubr.bf16.gmra.mxu0 %v704
        %v774 = vpop.f32.mrf.mxu0
        %v775 = vadd.f32 0.0, %v774
        %v776 = vpop.f32.mrf.mxu0
        %v777 = vpop.f32.mrf.mxu0
        %v778 = vadd.f32 0.0, %v777
        %v779 = vpop.f32.mrf.mxu0
        %780 = vmatprep.mubr.bf16.mxu0 0
        %781 = vmatmul.mubr.bf16.gmra.mxu0 %v707
        %v782 = vpop.f32.mrf.mxu0
        %v783 = vadd.f32 0.0, %v782
        %v784 = vpop.f32.mrf.mxu0
        %v785 = vpop.f32.mrf.mxu0
        %v786 = vadd.f32 0.0, %v785
        %v787 = vpop.f32.mrf.mxu0
        %788 = vmatprep.mubr.bf16.mxu0 0
        %789 = vmatmul.mubr.bf16.gmra.mxu0 %v710
        %v790 = vpop.f32.mrf.mxu0
        %v791 = vadd.f32 0.0, %v790
        %v792 = vpop.f32.mrf.mxu0
        %v793 = vpop.f32.mrf.mxu0
        %v794 = vadd.f32 0.0, %v793
        %v795 = vpop.f32.mrf.mxu0
        %796 = vmatprep.mubr.bf16.mxu0 0
        %797 = vmatmul.mubr.bf16.gmra.mxu0 %v713
        %v798 = vpop.f32.mrf.mxu0
        %v799 = vadd.f32 0.0, %v798
        %v800 = vpop.f32.mrf.mxu0
        %v801 = vpop.f32.mrf.mxu0
        %v802 = vadd.f32 0.0, %v801
        %v803 = vpop.f32.mrf.mxu0
        %804 = vmatprep.mubr.bf16.mxu0 0
        %805 = vmatmul.mubr.bf16.gmra.mxu0 %v716
        %v806 = vpop.f32.mrf.mxu0
        %v807 = vadd.f32 0.0, %v806
        %v808 = vpop.f32.mrf.mxu0
        %v809 = vpop.f32.mrf.mxu0
        %v810 = vadd.f32 0.0, %v809
        %v811 = vpop.f32.mrf.mxu0
        %812 = vmatprep.mubr.bf16.mxu0 0
        %813 = vmatmul.mubr.bf16.gmra.mxu0 %v719
        %v814 = vpop.f32.mrf.mxu0
        %v815 = vadd.f32 0.0, %v814
        %v816 = vpop.f32.mrf.mxu0
        %v817 = vpop.f32.mrf.mxu0
        %v818 = vadd.f32 0.0, %v817
        %v819 = vpop.f32.mrf.mxu0
        %820 = vdwg.mxu0
        %vm821 = vcmask 130048
        %822 = vst.msk [vmem:[%s164] sm:$0xff] %vm821, %v759
        %823 = vst.msk [vmem:[%s164 + $0x8] sm:$0xff] %vm821, %v762
        %824 = vst.msk [vmem:[%s164 + $0x10] sm:$0xff] %vm821, %v767
        %825 = vst.msk [vmem:[%s164 + $0x18] sm:$0xff] %vm821, %v770
        %826 = vst.msk [vmem:[%s164 + $0x20] sm:$0xff] %vm821, %v775
        %827 = vst.msk [vmem:[%s164 + $0x28] sm:$0xff] %vm821, %v778
        %828 = vst.msk [vmem:[%s164 + $0x30] sm:$0xff] %vm821, %v783
        %829 = vst.msk [vmem:[%s164 + $0x38] sm:$0xff] %vm821, %v786
        %830 = vst.msk [vmem:[%s164 + $0x40] sm:$0xff] %vm821, %v791
        %831 = vst.msk [vmem:[%s164 + $0x48] sm:$0xff] %vm821, %v794
        %832 = vst.msk [vmem:[%s164 + $0x50] sm:$0xff] %vm821, %v799
        %833 = vst.msk [vmem:[%s164 + $0x58] sm:$0xff] %vm821, %v802
        %834 = vst.msk [vmem:[%s164 + $0x60] sm:$0xff] %vm821, %v807
        %835 = vst.msk [vmem:[%s164 + $0x68] sm:$0xff] %vm821, %v810
        %836 = vst.msk [vmem:[%s164 + $0x70] sm:$0xff] %vm821, %v815
        %837 = vst.msk [vmem:[%s164 + $0x78] sm:$0xff] %vm821, %v818
        %s838 = sand.u32 %s93, 1
        %s839 = scalar_lea.sflag [#allocation4], %s838
        %s840 = sand.u32 %s93, 1
        %s841 = smul.addr %s840, 128
        %s842 = scalar_lea.vmem [#allocation3], %s841
        // Predicated region
        $region33: #{custom_deeplabv3_forward.3} parent=31 // pred_check
          %p843 = pneg %p103
        $region34: #{custom_deeplabv3_forward.3} parent=31 // pred_check_branch
          %845 = sbr.rel (%p843) target = $region36
        $region35: #{custom_deeplabv3_forward.3} parent=31 // pred_region
          %s846 = smul.u32 16, %s17
          %s848 = ssub.s32 2048, 2048
          %849 = vsyncadd %s839, %s848
          %s850 = smul.addr %s846, 128
          %s851 = scalar_lea.hbm %s3, %s850
          %s852 = sshll.u32 %s842, 4
          %s853 = int_to_ptr.vmem [resolvable:$true] %s852
          %858 = dma.vmem_to_hbm [thread:$0]  %s853, 2048, %s851, %s839, 128, 128, 8
        $region36: #{custom_deeplabv3_forward.3} parent=31 // pred_fallthru
          _
      $region32: #{custom_deeplabv3_forward.3} parent=5 // pred_fallthru
        _
      %p859 = scmp.le.s32.totalorder 2, %s12
      // Predicated region
      $region37: #{custom_deeplabv3_forward.3} parent=5 // pred_check
        %p860 = pneg %p859
      $region38: #{custom_deeplabv3_forward.3} parent=5 // pred_check_branch
        %862 = sbr.rel (%p860) target = $region40
      $region39: #{custom_deeplabv3_forward.3} parent=5 // pred_region
        %s863 = ssub.s32 %s12, 2
        // Predicated region
        $region41: #{custom_deeplabv3_forward.3} parent=39 // pred_check
          %p864 = pneg %p109
        $region42: #{custom_deeplabv3_forward.3} parent=39 // pred_check_branch
          %866 = sbr.rel (%p864) target = $region44
        $region43: #{custom_deeplabv3_forward.3} parent=39 // pred_region
          %s867 = sand.u32 %s94, 1
          %s868 = scalar_lea.sflag [#allocation4], %s867
          %s869 = sand.u32 %s94, 1
          %s870 = smul.addr %s869, 128
          %s871 = scalar_lea.vmem [#allocation3], %s870
          %872 = dma.done %s868, 2048
        $region44: #{custom_deeplabv3_forward.3} parent=39 // pred_fallthru
          _
      $region40: #{custom_deeplabv3_forward.3} parent=5 // pred_fallthru
        _
    $region6: #{custom_deeplabv3_forward.3} parent=1 // loop_footer
      %s16 = sadd.s32 1, %s12
    $region7: #{custom_deeplabv3_forward.3} parent=1 // loop_footer_branch
      %11 = sbr.rel target = $region3
    $region8: #{custom_deeplabv3_forward.3} parent=1 // loop_exit
      _
    %873 = vsyncpa [#allocation4], 1
    %s874 = scalar_lea.sflag [#allocation4], 1
    %875 = vsyncpa %s874, 1

</llo_original>
